<compile_context>
chip_gen: v5e
topology: v5e:2x2
jax: 0.10.0
libtpu: 0.0.40
codegen_flags: <defaults>
</compile_context>

<pallas_src>
import functools

import jax
import jax.numpy as jnp
from jax.experimental import pallas as pl
from jax.experimental.pallas import tpu as pltpu


def _decode_fused_kernel(x_ref, w_ref, r_ref, gamma_ref, beta_ref, o_ref, *,
                         H, W, F):
    # x_ref    : (N*H, W*Cin)        bf16  NHWC input, W folded into lanes
    # w_ref    : (3*W*Cin, 2*W*F)    bf16  [conv2 ky0;ky1;ky2 | conv1 @ center rows]
    # r_ref    : (W*F, s^2*W*F)      f32   0/1 nearest-upsample replication matrix
    # gamma_ref: (1, W*F)            f32   BN weight, pre-tiled over W
    # beta_ref : (1, W*F)            f32   BN bias,   pre-tiled over W
    # o_ref    : (N*H, s^2*W*F)      f32   upsampled relu(BN(merge)), lane-dense
    NH, WC = x_ref.shape
    WF = W * F

    # ---- stacked-K halo slab, assembled entirely in vregs -------------------
    xf = x_ref[...].astype(jnp.float32)                       # (NH, WC), exact
    row = jax.lax.broadcasted_iota(jnp.int32, (NH, WC), 0)
    up = pltpu.roll(xf, shift=1, axis=0)                      # row h-1 (circular)
    dn = pltpu.roll(xf, shift=NH - 1, axis=0)                 # row h+1 (circular)
    up = jnp.where(row % H == 0, 0.0, up)                     # zero top halo / no image leak
    dn = jnp.where(row % H == H - 1, 0.0, dn)                 # zero bottom halo / no image leak
    slab = jnp.concatenate([up, xf, dn], axis=1).astype(jnp.bfloat16)  # (NH, 3*WC)

    # ---- conv1(1x1) + conv2(3x3) + ReLU + add: ONE batched MXU matmul -------
    conv = jnp.dot(slab, w_ref[...], preferred_element_type=jnp.float32)   # (NH, 2*WF)
    merge = jnp.maximum(conv[:, :WF], 0.0) + jnp.maximum(conv[:, WF:], 0.0)

    # ---- training-mode BatchNorm (batch stats, two-pass biased var, eps=1e-5)
    inv_cnt = 1.0 / float(NH * W)

    def fold(v):                       # (1, WF) -> per-channel sums, tiled over W
        sh = WF // 2
        while sh >= F:                 # log2(W) XLU roll-and-add steps
            v = v + pltpu.roll(v, shift=sh, axis=1)
            sh //= 2
        return v

    mean_v = fold(jnp.sum(merge, axis=0, keepdims=True)) * inv_cnt       # (1, WF)
    diff = merge - mean_v
    var_v = fold(jnp.sum(diff * diff, axis=0, keepdims=True)) * inv_cnt  # (1, WF)
    scale_v = gamma_ref[...] * jax.lax.rsqrt(var_v + 1e-5)
    shift_v = beta_ref[...] - mean_v * scale_v
    y = jnp.maximum(merge * scale_v + shift_v, 0.0)                      # (NH, WF)

    # ---- fused nearest-neighbour upsample (exact 0/1 replication matmul) ----
    # Output row n*H+h holds the scale duplicated, W-upsampled rows back to
    # back; the wrapper reshape (N, sH, sW, F) is a pure reindex.
    o_ref[...] = jnp.dot(y, r_ref[...], preferred_element_type=jnp.float32)


def prepare_decode_params(params, *, W, scale=2):
    """Once-per-parameter-update weight prep (hoisted off the forward path)."""
    w1 = params["w1"].astype(jnp.float32)            # (Cin, F)    1x1 conv
    w2 = params["w2"].astype(jnp.float32)            # (9, Cin, F) 3x3 taps, idx=3*ky+kx
    Cin, F = w1.shape
    eyeW = jnp.eye(W, dtype=jnp.float32)

    # Block-diagonal ("kron") weights: conv == whole-batch matmul.
    w1bd = jnp.kron(eyeW, w1)                                        # (W*Cin, W*F)
    w2bd = []
    for ky in range(3):
        acc = jnp.zeros((W * Cin, W * F), jnp.float32)
        for kx in range(3):        # off-range kx blocks dropped -> 'same' W pad for free
            acc = acc + jnp.kron(jnp.eye(W, k=1 - kx, dtype=jnp.float32),
                                 w2[3 * ky + kx])
        w2bd.append(acc)
    zero = jnp.zeros((W * Cin, W * F), jnp.float32)
    w_fused = jnp.concatenate([
        jnp.concatenate([w2bd[0], zero], axis=1),     # rows fed by input row h-1 (ky=0)
        jnp.concatenate([w2bd[1], w1bd], axis=1),     # rows fed by input row h   (ky=1 + 1x1)
        jnp.concatenate([w2bd[2], zero], axis=1),     # rows fed by input row h+1 (ky=2)
    ], axis=0).astype(jnp.bfloat16)                   # (3*W*Cin, 2*W*F)

    # 0/1 replication matrix: W nearest-upsample (x scale) and H row
    # duplication (x scale) fused into one exact matmul.
    rw = jnp.kron(eyeW, jnp.kron(jnp.ones((1, scale), jnp.float32),
                                 jnp.eye(F, dtype=jnp.float32)))      # (W*F, s*W*F)
    r = jnp.concatenate([rw] * scale, axis=1)                         # (W*F, s^2*W*F)

    gamma_t = jnp.tile(params["gamma"].astype(jnp.float32), (1, W))   # (1, W*F)
    beta_t = jnp.tile(params["beta"].astype(jnp.float32), (1, W))
    return {"w_fused": w_fused, "r": r, "gamma_t": gamma_t, "beta_t": beta_t}


def decode_forward(x_nchw, prepped, *, scale=2):
    N, Cin, H, W = x_nchw.shape
    assert W & (W - 1) == 0, "channel fold assumes power-of-two W"
    WF = prepped["gamma_t"].shape[-1]
    F = WF // W

    # NCHW -> NHWC -> (N*H, W*Cin) bf16: one unavoidable layout copy, no pads.
    x2 = jnp.transpose(x_nchw, (0, 2, 3, 1)).reshape(N * H, W * Cin)
    x2 = x2.astype(jnp.bfloat16)

    kernel = functools.partial(_decode_fused_kernel, H=H, W=W, F=F)
    y2d = pl.pallas_call(
        kernel,
        out_shape=jax.ShapeDtypeStruct((N * H, scale * scale * WF), jnp.float32),
        compiler_params=pltpu.CompilerParams(vmem_limit_bytes=32 * 1024 * 1024),
    )(x2, prepped["w_fused"], prepped["r"], prepped["gamma_t"], prepped["beta_t"])

    # Pure reindexing epilogue: (N*H, s^2*W*F) -> (N, sH, sW, F) -> NCHW.
    y = y2d.reshape(N, scale * H, scale * W, F)
    return jnp.transpose(y, (0, 3, 1, 2))


# Pure-JAX reference (same bf16 conv operands, f32 accumulation) for checking.
def _ref_forward(x_nchw, params, scale=2):
    x = jnp.transpose(x_nchw, (0, 2, 3, 1)).astype(jnp.float32)       # NHWC
    Cin = x.shape[-1]
    F = params["gamma"].shape[-1]
    xb = x.astype(jnp.bfloat16)
    w1 = params["w1"].astype(jnp.bfloat16).reshape(1, 1, Cin, F)
    w2 = params["w2"].astype(jnp.bfloat16).reshape(3, 3, Cin, F)
    conv = lambda inp, w: jax.lax.conv_general_dilated(
        inp, w, (1, 1), "SAME",
        dimension_numbers=("NHWC", "HWIO", "NHWC"),
        preferred_element_type=jnp.float32)
    x1 = jax.nn.relu(conv(xb, w1))
    x2 = jax.nn.relu(conv(xb, w2))
    merge = x1 + x2
    up = jnp.repeat(jnp.repeat(merge, scale, axis=1), scale, axis=2)
    mean = jnp.mean(up, axis=(0, 1, 2))
    var = jnp.mean((up - mean) ** 2, axis=(0, 1, 2))                  # biased
    y = (up - mean) * jax.lax.rsqrt(var + 1e-5) * params["gamma"][0] + params["beta"][0]
    y = jax.nn.relu(y)
    return jnp.transpose(y, (0, 3, 1, 2))                             # NCHW


if __name__ == "__main__":
    N, Cin, H, W = 2, 8, 16, 16      # batch, in_channel, spatial
    F, scale = 16, 2                 # filters, upsample factor

    key = jax.random.PRNGKey(0)
    k1, k2, kx = jax.random.split(key, 3)
    b1 = (6.0 / Cin) ** 0.5          # kaiming_uniform fan_in relu (conv1)
    b2 = 1.0 / (Cin * 9) ** 0.5      # ~PyTorch default conv init (conv2)
    params = {
        "w1": jax.random.uniform(k1, (Cin, F), jnp.float32, -b1, b1),     # 1x1: (Cin, F)
        "w2": jax.random.uniform(k2, (9, Cin, F), jnp.float32, -b2, b2),  # 3x3 taps flat
        "gamma": jnp.ones((1, F), jnp.float32),    # BatchNorm weight
        "beta": jnp.zeros((1, F), jnp.float32),    # BatchNorm bias
    }
    x = jax.random.normal(kx, (N, Cin, H, W), jnp.float32)   # NCHW, like PyTorch

    # Weight prep runs once per parameter update, NOT on the forward hot path.
    prepped = prepare_decode_params(params, W=W, scale=scale)

    fwd = jax.jit(functools.partial(decode_forward, scale=scale))
    out = fwd(x, prepped)
    jax.block_until_ready(out)

    ref = _ref_forward(x, params, scale=scale)
    assert out.shape == (N, F, H * scale, W * scale), out.shape
    assert bool(jnp.allclose(out, ref, atol=5e-4, rtol=5e-4)), \
        float(jnp.max(jnp.abs(out - ref)))
    print("KERNEL_OK")
</pallas_src>

<mosaic_0001>
module attributes {stable_mosaic.version = 11 : i64} {
  func.func @_decode_fused_kernel(%arg0: memref<32x128xbf16, #tpu.memory_space<vmem>>, %arg1: memref<384x512xbf16, #tpu.memory_space<vmem>>, %arg2: memref<256x1024xf32, #tpu.memory_space<vmem>>, %arg3: memref<1x256xf32, #tpu.memory_space<vmem>>, %arg4: memref<1x256xf32, #tpu.memory_space<vmem>>, %arg5: memref<32x1024xf32, #tpu.memory_space<vmem>>) attributes {dimension_semantics = [], scalar_prefetch = 0 : i64, scratch_operands = 0 : i64, tpu.core_type = #tpu.core_type<tc>} {
    %c0 = arith.constant 0 : index
    %c0_0 = arith.constant 0 : index
    %0 = vector.load %arg0[%c0, %c0_0] : memref<32x128xbf16, #tpu.memory_space<vmem>>, vector<32x128xbf16>
    %1 = arith.extf %0 : vector<32x128xbf16> to vector<32x128xf32>
    %2 = tpu.iota {dimensions = array<i32: 0>} : vector<32x128xi32>
    %c1_i32 = arith.constant 1 : i32
    %3 = tpu.dynamic_rotate %1 by %c1_i32 dim 0 : vector<32x128xf32>, i32 -> vector<32x128xf32>
    %c31_i32 = arith.constant 31 : i32
    %4 = tpu.dynamic_rotate %1 by %c31_i32 dim 0 : vector<32x128xf32>, i32 -> vector<32x128xf32>
    %c16_i32 = arith.constant 16 : i32
    %c0_i32 = arith.constant 0 : i32
    %5 = arith.cmpi eq, %c16_i32, %c0_i32 : i32
    %c1_i32_1 = arith.constant 1 : i32
    %6 = arith.select %5, %c1_i32_1, %c16_i32 : i32
    %7 = vector.broadcast %6 : i32 to vector<32x128xi32>
    %8 = arith.remsi %2, %7 : vector<32x128xi32>
    %c0_i32_2 = arith.constant 0 : i32
    %9 = vector.broadcast %c0_i32_2 : i32 to vector<32x128xi32>
    %10 = arith.cmpi ne, %8, %9 : vector<32x128xi32>
    %c0_i32_3 = arith.constant 0 : i32
    %11 = vector.broadcast %c0_i32_3 : i32 to vector<32x128xi32>
    %12 = arith.cmpi slt, %8, %11 : vector<32x128xi32>
    %c0_i32_4 = arith.constant 0 : i32
    %13 = arith.cmpi slt, %6, %c0_i32_4 : i32
    %14 = vector.broadcast %13 : i1 to vector<32x128xi1>
    %15 = vector.broadcast %14 : vector<32x128xi1> to vector<32x128xi1>
    %16 = arith.xori %12, %15 : vector<32x128xi1>
    %17 = arith.andi %16, %10 : vector<32x128xi1>
    %18 = vector.broadcast %6 : i32 to vector<32x128xi32>
    %19 = arith.addi %8, %18 : vector<32x128xi32>
    %20 = arith.select %17, %19, %8 : vector<32x128xi1>, vector<32x128xi32>
    %c0_i32_5 = arith.constant 0 : i32
    %21 = vector.broadcast %c0_i32_5 : i32 to vector<32x128xi32>
    %22 = arith.cmpi eq, %20, %21 : vector<32x128xi32>
    %cst = arith.constant 0.000000e+00 : f32
    %23 = vector.broadcast %cst : f32 to vector<32x128xf32>
    %24 = arith.select %22, %23, %3 : vector<32x128xi1>, vector<32x128xf32>
    %c16_i32_6 = arith.constant 16 : i32
    %c0_i32_7 = arith.constant 0 : i32
    %25 = arith.cmpi eq, %c16_i32_6, %c0_i32_7 : i32
    %c1_i32_8 = arith.constant 1 : i32
    %26 = arith.select %25, %c1_i32_8, %c16_i32_6 : i32
    %27 = vector.broadcast %26 : i32 to vector<32x128xi32>
    %28 = arith.remsi %2, %27 : vector<32x128xi32>
    %c0_i32_9 = arith.constant 0 : i32
    %29 = vector.broadcast %c0_i32_9 : i32 to vector<32x128xi32>
    %30 = arith.cmpi ne, %28, %29 : vector<32x128xi32>
    %c0_i32_10 = arith.constant 0 : i32
    %31 = vector.broadcast %c0_i32_10 : i32 to vector<32x128xi32>
    %32 = arith.cmpi slt, %28, %31 : vector<32x128xi32>
    %c0_i32_11 = arith.constant 0 : i32
    %33 = arith.cmpi slt, %26, %c0_i32_11 : i32
    %34 = vector.broadcast %33 : i1 to vector<32x128xi1>
    %35 = vector.broadcast %34 : vector<32x128xi1> to vector<32x128xi1>
    %36 = arith.xori %32, %35 : vector<32x128xi1>
    %37 = arith.andi %36, %30 : vector<32x128xi1>
    %38 = vector.broadcast %26 : i32 to vector<32x128xi32>
    %39 = arith.addi %28, %38 : vector<32x128xi32>
    %40 = arith.select %37, %39, %28 : vector<32x128xi1>, vector<32x128xi32>
    %c15_i32 = arith.constant 15 : i32
    %41 = vector.broadcast %c15_i32 : i32 to vector<32x128xi32>
    %42 = arith.cmpi eq, %40, %41 : vector<32x128xi32>
    %cst_12 = arith.constant 0.000000e+00 : f32
    %43 = vector.broadcast %cst_12 : f32 to vector<32x128xf32>
    %44 = arith.select %42, %43, %4 : vector<32x128xi1>, vector<32x128xf32>
    %45 = tpu.concatenate %24, %1, %44 in 1 : vector<32x128xf32>, vector<32x128xf32>, vector<32x128xf32> -> vector<32x384xf32>
    %46 = arith.truncf %45 : vector<32x384xf32> to vector<32x384xbf16>
    %c0_13 = arith.constant 0 : index
    %c0_14 = arith.constant 0 : index
    %47 = vector.load %arg1[%c0_13, %c0_14] : memref<384x512xbf16, #tpu.memory_space<vmem>>, vector<384x512xbf16>
    %cst_15 = arith.constant dense<0.000000e+00> : vector<32x512xf32>
    %48 = tpu.matmul %46, %47, %cst_15 {dimension_numbers = #tpu.dot_dimension_numbers<[1], [0], [0], [1], [0, 0, 1, 1], [], []>} : vector<32x384xbf16>, vector<384x512xbf16>, vector<32x512xf32> -> vector<32x512xf32>
    %49 = vector.extract_strided_slice %48 {offsets = [0, 0], sizes = [32, 256], strides = [1, 1]} : vector<32x512xf32> to vector<32x256xf32>
    %cst_16 = arith.constant 0.000000e+00 : f32
    %50 = vector.broadcast %cst_16 : f32 to vector<32x256xf32>
    %51 = arith.maximumf %49, %50 : vector<32x256xf32>
    %52 = vector.extract_strided_slice %48 {offsets = [0, 256], sizes = [32, 256], strides = [1, 1]} : vector<32x512xf32> to vector<32x256xf32>
    %cst_17 = arith.constant 0.000000e+00 : f32
    %53 = vector.broadcast %cst_17 : f32 to vector<32x256xf32>
    %54 = arith.maximumf %52, %53 : vector<32x256xf32>
    %55 = arith.addf %51, %54 : vector<32x256xf32>
    %cst_18 = arith.constant dense<0.000000e+00> : vector<256xf32>
    %56 = vector.multi_reduction <add>, %55, %cst_18 [0] : vector<32x256xf32> to vector<256xf32>
    %57 = vector.shape_cast %56 : vector<256xf32> to vector<1x256xf32>
    %c128_i32 = arith.constant 128 : i32
    %58 = tpu.dynamic_rotate %57 by %c128_i32 dim 1 : vector<1x256xf32>, i32 -> vector<1x256xf32>
    %59 = arith.addf %57, %58 : vector<1x256xf32>
    %c64_i32 = arith.constant 64 : i32
    %60 = tpu.dynamic_rotate %59 by %c64_i32 dim 1 : vector<1x256xf32>, i32 -> vector<1x256xf32>
    %61 = arith.addf %59, %60 : vector<1x256xf32>
    %c32_i32 = arith.constant 32 : i32
    %62 = tpu.dynamic_rotate %61 by %c32_i32 dim 1 : vector<1x256xf32>, i32 -> vector<1x256xf32>
    %63 = arith.addf %61, %62 : vector<1x256xf32>
    %c16_i32_19 = arith.constant 16 : i32
    %64 = tpu.dynamic_rotate %63 by %c16_i32_19 dim 1 : vector<1x256xf32>, i32 -> vector<1x256xf32>
    %65 = arith.addf %63, %64 : vector<1x256xf32>
    %cst_20 = arith.constant 0.001953125 : f32
    %66 = vector.broadcast %cst_20 : f32 to vector<1x256xf32>
    %67 = arith.mulf %65, %66 : vector<1x256xf32>
    %68 = vector.broadcast %67 : vector<1x256xf32> to vector<32x256xf32>
    %69 = arith.subf %55, %68 : vector<32x256xf32>
    %70 = arith.mulf %69, %69 : vector<32x256xf32>
    %cst_21 = arith.constant dense<0.000000e+00> : vector<256xf32>
    %71 = vector.multi_reduction <add>, %70, %cst_21 [0] : vector<32x256xf32> to vector<256xf32>
    %72 = vector.shape_cast %71 : vector<256xf32> to vector<1x256xf32>
    %c128_i32_22 = arith.constant 128 : i32
    %73 = tpu.dynamic_rotate %72 by %c128_i32_22 dim 1 : vector<1x256xf32>, i32 -> vector<1x256xf32>
    %74 = arith.addf %72, %73 : vector<1x256xf32>
    %c64_i32_23 = arith.constant 64 : i32
    %75 = tpu.dynamic_rotate %74 by %c64_i32_23 dim 1 : vector<1x256xf32>, i32 -> vector<1x256xf32>
    %76 = arith.addf %74, %75 : vector<1x256xf32>
    %c32_i32_24 = arith.constant 32 : i32
    %77 = tpu.dynamic_rotate %76 by %c32_i32_24 dim 1 : vector<1x256xf32>, i32 -> vector<1x256xf32>
    %78 = arith.addf %76, %77 : vector<1x256xf32>
    %c16_i32_25 = arith.constant 16 : i32
    %79 = tpu.dynamic_rotate %78 by %c16_i32_25 dim 1 : vector<1x256xf32>, i32 -> vector<1x256xf32>
    %80 = arith.addf %78, %79 : vector<1x256xf32>
    %cst_26 = arith.constant 0.001953125 : f32
    %81 = vector.broadcast %cst_26 : f32 to vector<1x256xf32>
    %82 = arith.mulf %80, %81 : vector<1x256xf32>
    %c0_27 = arith.constant 0 : index
    %c0_28 = arith.constant 0 : index
    %83 = vector.load %arg3[%c0_27, %c0_28] : memref<1x256xf32, #tpu.memory_space<vmem>>, vector<1x256xf32>
    %cst_29 = arith.constant 9.99999974E-6 : f32
    %84 = vector.broadcast %cst_29 : f32 to vector<1x256xf32>
    %85 = arith.addf %82, %84 : vector<1x256xf32>
    %86 = math.rsqrt %85 : vector<1x256xf32>
    %87 = arith.mulf %83, %86 : vector<1x256xf32>
    %c0_30 = arith.constant 0 : index
    %c0_31 = arith.constant 0 : index
    %88 = vector.load %arg4[%c0_30, %c0_31] : memref<1x256xf32, #tpu.memory_space<vmem>>, vector<1x256xf32>
    %89 = arith.mulf %67, %87 : vector<1x256xf32>
    %90 = arith.subf %88, %89 : vector<1x256xf32>
    %91 = vector.broadcast %87 : vector<1x256xf32> to vector<32x256xf32>
    %92 = arith.mulf %55, %91 : vector<32x256xf32>
    %93 = vector.broadcast %90 : vector<1x256xf32> to vector<32x256xf32>
    %94 = arith.addf %92, %93 : vector<32x256xf32>
    %cst_32 = arith.constant 0.000000e+00 : f32
    %95 = vector.broadcast %cst_32 : f32 to vector<32x256xf32>
    %96 = arith.maximumf %94, %95 : vector<32x256xf32>
    %c0_33 = arith.constant 0 : index
    %c0_34 = arith.constant 0 : index
    %97 = vector.load %arg2[%c0_33, %c0_34] : memref<256x1024xf32, #tpu.memory_space<vmem>>, vector<256x1024xf32>
    %cst_35 = arith.constant dense<0.000000e+00> : vector<32x1024xf32>
    %98 = tpu.matmul %96, %97, %cst_35 {dimension_numbers = #tpu.dot_dimension_numbers<[1], [0], [0], [1], [0, 0, 1, 1], [], []>} : vector<32x256xf32>, vector<256x1024xf32>, vector<32x1024xf32> -> vector<32x1024xf32>
    %c0_36 = arith.constant 0 : index
    %c0_37 = arith.constant 0 : index
    %99 = vector.load %arg5[%c0_36, %c0_37] : memref<32x1024xf32, #tpu.memory_space<vmem>>, vector<32x1024xf32>
    tpu.vector_store %arg5[%c0_36, %c0_37], %98 {strides = array<i32>} : memref<32x1024xf32, #tpu.memory_space<vmem>>, vector<32x1024xf32>,
    return
  }
}

</mosaic_0001>

<llo_original>
// kernel: decode_forward.1
$region0: #{decode_forward.1}
  #allocation0 [shape = 'u32[]', space=smem, size = 0x4, offset = 0x4, fixed_abs, tag = 'smem constant byte address 0x4 - core index']
  #allocation1 [shape = 'u32[72,128]{1,0:T(1,128)}', space=vmem, size = 0x9000, scoped, tag = 'internal scratch']
  %s0 = inlined_call_operand.vmem [shape: bf16[32,128], index: 0, kind: input, shape index: {}]
  %s1 = inlined_call_operand.vmem [shape: bf16[384,512], index: 1, kind: input, shape index: {}]
  %s2 = inlined_call_operand.hbm [shape: f32[256,1024], index: 2, kind: input, shape index: {}]
  %s3 = inlined_call_operand.vmem [shape: f32[1,256], index: 3, kind: input, shape index: {}]
  %s4 = inlined_call_operand.vmem [shape: f32[1,256], index: 4, kind: input, shape index: {}]
  %s5 = inlined_call_operand.vmem [shape: f32[32,1024], index: 5, kind: output, shape index: {}]
  %s6 = sld [smem:[#allocation0]]
  $region34: #{decode_forward.1} parent=0
    _
  %s8 = ssub.s32 1, %s6
  %s9 = scalar_select 0, %s8, %s6
  $region1: #{decode_forward.1} parent=0
    #allocation2 [shape = 'u8[1048576]{0}', space=vmem, size = 0x100000, scoped, tag = 'input window, operand 2, single buffered']
    #allocation3 [shape = 's32[1]{0}', space=sflag, size = 0x4, scoped, tag = 'scoped memory for decode_forward.1']
    %10 = vsyncpa [#allocation3], 0
    // Predicated region
    $region2: #{decode_forward.1} parent=1 // pred_check
      _
    $region3: #{decode_forward.1} parent=1 // pred_check_branch
      %12 = sbr.rel (0) target = $region5
    $region4: #{decode_forward.1} parent=1 // pred_region
      _
    $region5: #{decode_forward.1} parent=1 // pred_fallthru
      _
    // Predicated region
    $region6: #{decode_forward.1} parent=1 // pred_check
      _
    $region7: #{decode_forward.1} parent=1 // pred_check_branch
      %14 = sbr.rel (0) target = $region9
    $region8: #{decode_forward.1} parent=1 // pred_region
      _
    $region9: #{decode_forward.1} parent=1 // pred_fallthru
      _
    // Predicated region
    $region10: #{decode_forward.1} parent=1 // pred_check
      _
    $region11: #{decode_forward.1} parent=1 // pred_check_branch
      %16 = sbr.rel (0) target = $region13
    $region12: #{decode_forward.1} parent=1 // pred_region
      %18 = vsyncadd [#allocation3], 0
      %s19 = sshll.u32 %s2, 4
      %s20 = int_to_ptr.hbm [resolvable:$true] %s19
      %s21 = sshll.u32 [#allocation2], 4
      %s22 = int_to_ptr.vmem [resolvable:$true] %s21
      %27 = dma.hbm_to_vmem [thread:$0]  %s20, 32768, %s22, [#allocation3], 1024, 1024, 64
    $region13: #{decode_forward.1} parent=1 // pred_fallthru
      _
    // Predicated region
    $region14: #{decode_forward.1} parent=1 // pred_check
      _
    $region15: #{decode_forward.1} parent=1 // pred_check_branch
      %29 = sbr.rel (0) target = $region17
    $region16: #{decode_forward.1} parent=1 // pred_region
      _
    $region17: #{decode_forward.1} parent=1 // pred_fallthru
      _
    // Predicated region
    $region18: #{decode_forward.1} parent=1 // pred_check
      _
    $region19: #{decode_forward.1} parent=1 // pred_check_branch
      %31 = sbr.rel (0) target = $region21
    $region20: #{decode_forward.1} parent=1 // pred_region
      _
    $region21: #{decode_forward.1} parent=1 // pred_fallthru
      _
    // Predicated region
    $region22: #{decode_forward.1} parent=1 // pred_check
      _
    $region23: #{decode_forward.1} parent=1 // pred_check_branch
      %33 = sbr.rel (0) target = $region25
    $region24: #{decode_forward.1} parent=1 // pred_region
      %35 = dma.done [#allocation3], 32768
    $region25: #{decode_forward.1} parent=1 // pred_fallthru
      _
    %v36 = vld [vmem:[%s0] sm:$0xf]
    %v37 = vld [vmem:[%s0 + $0x4] sm:$0xf]
    %v38 = vld [vmem:[%s0 + $0x8] sm:$0xf]
    %v39 = vld [vmem:[%s0 + $0xc] sm:$0xf]
    %v40 = vunpack.c.l.bf16 %v36
    %v41 = vunpack.c.l.bf16 %v37
    %v42 = vunpack.c.l.bf16 %v38
    %v43 = vunpack.c.l.bf16 %v39
    %v44 = vlaneseq
    %v45 = vshrl.u32 %v44, 7
    %v46 = vadd.s32 %v45, 8
    %v47 = vadd.s32 %v45, 16
    %v48 = vadd.s32 %v45, 24
    %v49 = vrot.slane %v40, 7
    %v50 = vrot.slane %v41, 7
    %v51 = vrot.slane %v42, 7
    %v52 = vrot.slane %v43, 7
    %vm53 = vcmp.lt.s32.totalorder %v45, 1
    %v54 = vsel %vm53, %v51, %v52
    %v55 = vsel %vm53, %v50, %v51
    %v56 = vsel %vm53, %v49, %v50
    %v57 = vsel %vm53, %v52, %v49
    %v58 = vrot.slane %v40, 1
    %v59 = vrot.slane %v41, 1
    %v60 = vrot.slane %v42, 1
    %v61 = vrot.slane %v43, 1
    %vm62 = vcmp.lt.s32.totalorder %v45, 7
    %v63 = vsel %vm62, %v60, %v61
    %v64 = vsel %vm62, %v59, %v60
    %v65 = vsel %vm62, %v58, %v59
    %v66 = vsel %vm62, %v61, %v58
    %vm67 = vcmp.lt.s32.totalorder %v45, 0
    %v68 = vsub.s32 0, %v45
    %v69 = vsel %vm67, %v68, %v45
    %v70 = vshrl.u32 %v69, 4
    %v71 = vand.u32 %v69, 15
    %v72 = vsub.s32 0, %v71
    %v73 = vsel %vm67, %v72, %v71
    %vm74 = vcmp.lt.s32.totalorder %v46, 0
    %v75 = vsub.s32 0, %v46
    %v76 = vsel %vm74, %v75, %v46
    %v77 = vshrl.u32 %v76, 4
    %v78 = vand.u32 %v76, 15
    %v79 = vsub.s32 0, %v78
    %v80 = vsel %vm74, %v79, %v78
    %vm81 = vcmp.lt.s32.totalorder %v47, 0
    %v82 = vsub.s32 0, %v47
    %v83 = vsel %vm81, %v82, %v47
    %v84 = vshrl.u32 %v83, 4
    %v85 = vand.u32 %v83, 15
    %v86 = vsub.s32 0, %v85
    %v87 = vsel %vm81, %v86, %v85
    %vm88 = vcmp.lt.s32.totalorder %v48, 0
    %v89 = vsub.s32 0, %v48
    %v90 = vsel %vm88, %v89, %v48
    %v91 = vshrl.u32 %v90, 4
    %v92 = vand.u32 %v90, 15
    %v93 = vsub.s32 0, %v92
    %v94 = vsel %vm88, %v93, %v92
    %vm95 = vcmp.ne.s32.totalorder %v73, 0
    %vm96 = vcmp.ne.s32.totalorder %v80, 0
    %vm97 = vcmp.ne.s32.totalorder %v87, 0
    %vm98 = vcmp.ne.s32.totalorder %v94, 0
    %vm99 = vcmp.lt.s32.totalorder %v73, 0
    %vm100 = vcmp.lt.s32.totalorder %v80, 0
    %vm101 = vcmp.lt.s32.totalorder %v87, 0
    %vm102 = vcmp.lt.s32.totalorder %v94, 0
    %vm103 = vmand %vm99, %vm95
    %vm104 = vmand %vm100, %vm96
    %vm105 = vmand %vm101, %vm97
    %vm106 = vmand %vm102, %vm98
    %v107 = vadd.s32 %v73, 16
    %v108 = vadd.s32 %v80, 16
    %v109 = vadd.s32 %v87, 16
    %v110 = vadd.s32 %v94, 16
    %v111 = vsel %vm103, %v107, %v73
    %v112 = vsel %vm104, %v108, %v80
    %v113 = vsel %vm105, %v109, %v87
    %v114 = vsel %vm106, %v110, %v94
    %vm115 = vcmp.eq.s32.totalorder %v111, 0
    %vm116 = vcmp.eq.s32.totalorder %v112, 0
    %vm117 = vcmp.eq.s32.totalorder %v113, 0
    %vm118 = vcmp.eq.s32.totalorder %v114, 0
    %v119 = vsel %vm115, 0.0, %v57
    %v120 = vsel %vm116, 0.0, %v56
    %v121 = vsel %vm117, 0.0, %v55
    %v122 = vsel %vm118, 0.0, %v54
    %vm123 = vcmp.eq.s32.totalorder %v111, 15
    %vm124 = vcmp.eq.s32.totalorder %v112, 15
    %vm125 = vcmp.eq.s32.totalorder %v113, 15
    %vm126 = vcmp.eq.s32.totalorder %v114, 15
    %v127 = vsel %vm123, 0.0, %v65
    %v128 = vsel %vm124, 0.0, %v64
    %v129 = vsel %vm125, 0.0, %v63
    %v130 = vsel %vm126, 0.0, %v66
    %v131 = vpack.c.bf16 %v120, %v119
    %v132 = vpack.c.bf16 %v41, %v40
    %v133 = vpack.c.bf16 %v128, %v127
    %v134 = vpack.c.bf16 %v122, %v121
    %v135 = vpack.c.bf16 %v43, %v42
    %v136 = vpack.c.bf16 %v130, %v129
    %v137 = vld [vmem:[%s1] sm:$0xff]
    %v138 = vld [vmem:[%s1 + $0x8] sm:$0xff]
    %v139 = vld [vmem:[%s1 + $0x10] sm:$0xff]
    %v140 = vld [vmem:[%s1 + $0x18] sm:$0xff]
    %v141 = vld [vmem:[%s1 + $0x20] sm:$0xff]
    %v142 = vld [vmem:[%s1 + $0x28] sm:$0xff]
    %v143 = vld [vmem:[%s1 + $0x30] sm:$0xff]
    %v144 = vld [vmem:[%s1 + $0x38] sm:$0xff]
    %v145 = vld [vmem:[%s1 + $0x40] sm:$0xff]
    %v146 = vld [vmem:[%s1 + $0x48] sm:$0xff]
    %v147 = vld [vmem:[%s1 + $0x50] sm:$0xff]
    %v148 = vld [vmem:[%s1 + $0x58] sm:$0xff]
    %v149 = vld [vmem:[%s1 + $0x60] sm:$0xff]
    %v150 = vld [vmem:[%s1 + $0x68] sm:$0xff]
    %v151 = vld [vmem:[%s1 + $0x70] sm:$0xff]
    %v152 = vld [vmem:[%s1 + $0x78] sm:$0xff]
    %v153 = vld [vmem:[%s1 + $0x80] sm:$0xff]
    %v154 = vld [vmem:[%s1 + $0x88] sm:$0xff]
    %v155 = vld [vmem:[%s1 + $0x90] sm:$0xff]
    %v156 = vld [vmem:[%s1 + $0x98] sm:$0xff]
    %v157 = vld [vmem:[%s1 + $0xa0] sm:$0xff]
    %v158 = vld [vmem:[%s1 + $0xa8] sm:$0xff]
    %v159 = vld [vmem:[%s1 + $0xb0] sm:$0xff]
    %v160 = vld [vmem:[%s1 + $0xb8] sm:$0xff]
    %v161 = vld [vmem:[%s1 + $0xc0] sm:$0xff]
    %v162 = vld [vmem:[%s1 + $0xc8] sm:$0xff]
    %v163 = vld [vmem:[%s1 + $0xd0] sm:$0xff]
    %v164 = vld [vmem:[%s1 + $0xd8] sm:$0xff]
    %v165 = vld [vmem:[%s1 + $0xe0] sm:$0xff]
    %v166 = vld [vmem:[%s1 + $0xe8] sm:$0xff]
    %v167 = vld [vmem:[%s1 + $0xf0] sm:$0xff]
    %v168 = vld [vmem:[%s1 + $0xf8] sm:$0xff]
    %v169 = vld [vmem:[%s1 + $0x100] sm:$0xff]
    %v170 = vld [vmem:[%s1 + $0x108] sm:$0xff]
    %v171 = vld [vmem:[%s1 + $0x110] sm:$0xff]
    %v172 = vld [vmem:[%s1 + $0x118] sm:$0xff]
    %v173 = vld [vmem:[%s1 + $0x120] sm:$0xff]
    %v174 = vld [vmem:[%s1 + $0x128] sm:$0xff]
    %v175 = vld [vmem:[%s1 + $0x130] sm:$0xff]
    %v176 = vld [vmem:[%s1 + $0x138] sm:$0xff]
    %v177 = vld [vmem:[%s1 + $0x140] sm:$0xff]
    %v178 = vld [vmem:[%s1 + $0x148] sm:$0xff]
    %v179 = vld [vmem:[%s1 + $0x150] sm:$0xff]
    %v180 = vld [vmem:[%s1 + $0x158] sm:$0xff]
    %v181 = vld [vmem:[%s1 + $0x160] sm:$0xff]
    %v182 = vld [vmem:[%s1 + $0x168] sm:$0xff]
    %v183 = vld [vmem:[%s1 + $0x170] sm:$0xff]
    %v184 = vld [vmem:[%s1 + $0x178] sm:$0xff]
    %v185 = vld [vmem:[%s1 + $0x180] sm:$0xff]
    %v186 = vld [vmem:[%s1 + $0x188] sm:$0xff]
    %v187 = vld [vmem:[%s1 + $0x190] sm:$0xff]
    %v188 = vld [vmem:[%s1 + $0x198] sm:$0xff]
    %v189 = vld [vmem:[%s1 + $0x1a0] sm:$0xff]
    %v190 = vld [vmem:[%s1 + $0x1a8] sm:$0xff]
    %v191 = vld [vmem:[%s1 + $0x1b0] sm:$0xff]
    %v192 = vld [vmem:[%s1 + $0x1b8] sm:$0xff]
    %v193 = vld [vmem:[%s1 + $0x1c0] sm:$0xff]
    %v194 = vld [vmem:[%s1 + $0x1c8] sm:$0xff]
    %v195 = vld [vmem:[%s1 + $0x1d0] sm:$0xff]
    %v196 = vld [vmem:[%s1 + $0x1d8] sm:$0xff]
    %v197 = vld [vmem:[%s1 + $0x1e0] sm:$0xff]
    %v198 = vld [vmem:[%s1 + $0x1e8] sm:$0xff]
    %v199 = vld [vmem:[%s1 + $0x1f0] sm:$0xff]
    %v200 = vld [vmem:[%s1 + $0x1f8] sm:$0xff]
    %v201 = vld [vmem:[%s1 + $0x200] sm:$0xff]
    %v202 = vld [vmem:[%s1 + $0x208] sm:$0xff]
    %v203 = vld [vmem:[%s1 + $0x210] sm:$0xff]
    %v204 = vld [vmem:[%s1 + $0x218] sm:$0xff]
    %v205 = vld [vmem:[%s1 + $0x220] sm:$0xff]
    %v206 = vld [vmem:[%s1 + $0x228] sm:$0xff]
    %v207 = vld [vmem:[%s1 + $0x230] sm:$0xff]
    %v208 = vld [vmem:[%s1 + $0x238] sm:$0xff]
    %v209 = vld [vmem:[%s1 + $0x240] sm:$0xff]
    %v210 = vld [vmem:[%s1 + $0x248] sm:$0xff]
    %v211 = vld [vmem:[%s1 + $0x250] sm:$0xff]
    %v212 = vld [vmem:[%s1 + $0x258] sm:$0xff]
    %v213 = vld [vmem:[%s1 + $0x260] sm:$0xff]
    %v214 = vld [vmem:[%s1 + $0x268] sm:$0xff]
    %v215 = vld [vmem:[%s1 + $0x270] sm:$0xff]
    %v216 = vld [vmem:[%s1 + $0x278] sm:$0xff]
    %v217 = vld [vmem:[%s1 + $0x280] sm:$0xff]
    %v218 = vld [vmem:[%s1 + $0x288] sm:$0xff]
    %v219 = vld [vmem:[%s1 + $0x290] sm:$0xff]
    %v220 = vld [vmem:[%s1 + $0x298] sm:$0xff]
    %v221 = vld [vmem:[%s1 + $0x2a0] sm:$0xff]
    %v222 = vld [vmem:[%s1 + $0x2a8] sm:$0xff]
    %v223 = vld [vmem:[%s1 + $0x2b0] sm:$0xff]
    %v224 = vld [vmem:[%s1 + $0x2b8] sm:$0xff]
    %v225 = vld [vmem:[%s1 + $0x2c0] sm:$0xff]
    %v226 = vld [vmem:[%s1 + $0x2c8] sm:$0xff]
    %v227 = vld [vmem:[%s1 + $0x2d0] sm:$0xff]
    %v228 = vld [vmem:[%s1 + $0x2d8] sm:$0xff]
    %v229 = vld [vmem:[%s1 + $0x2e0] sm:$0xff]
    %v230 = vld [vmem:[%s1 + $0x2e8] sm:$0xff]
    %v231 = vld [vmem:[%s1 + $0x2f0] sm:$0xff]
    %v232 = vld [vmem:[%s1 + $0x2f8] sm:$0xff]
    %v329 = vunpack.c.l.b16 %v137
    %v330 = vunpack.c.h.b16 %v137
    %v331 = vunpack.c.l.b16 %v138
    %v332 = vunpack.c.h.b16 %v138
    %v333 = vunpack.c.l.b16 %v139
    %v334 = vunpack.c.h.b16 %v139
    %v335 = vunpack.c.l.b16 %v140
    %v336 = vunpack.c.h.b16 %v140
    %v337 = vunpack.c.l.b16 %v141
    %v338 = vunpack.c.h.b16 %v141
    %v339 = vunpack.c.l.b16 %v142
    %v340 = vunpack.c.h.b16 %v142
    %v341 = vunpack.c.l.b16 %v143
    %v342 = vunpack.c.h.b16 %v143
    %v343 = vunpack.c.l.b16 %v144
    %v344 = vunpack.c.h.b16 %v144
    %v345 = vunpack.c.l.b16 %v145
    %v346 = vunpack.c.h.b16 %v145
    %v347 = vunpack.c.l.b16 %v146
    %v348 = vunpack.c.h.b16 %v146
    %v349 = vunpack.c.l.b16 %v147
    %v350 = vunpack.c.h.b16 %v147
    %v351 = vunpack.c.l.b16 %v148
    %v352 = vunpack.c.h.b16 %v148
    %v353 = vunpack.c.l.b16 %v149
    %v354 = vunpack.c.h.b16 %v149
    %v355 = vunpack.c.l.b16 %v150
    %v356 = vunpack.c.h.b16 %v150
    %v357 = vunpack.c.l.b16 %v151
    %v358 = vunpack.c.h.b16 %v151
    %v359 = vunpack.c.l.b16 %v152
    %v360 = vunpack.c.h.b16 %v152
    %v361 = vunpack.c.l.b16 %v153
    %v362 = vunpack.c.h.b16 %v153
    %v363 = vunpack.c.l.b16 %v154
    %v364 = vunpack.c.h.b16 %v154
    %v365 = vunpack.c.l.b16 %v155
    %v366 = vunpack.c.h.b16 %v155
    %v367 = vunpack.c.l.b16 %v156
    %v368 = vunpack.c.h.b16 %v156
    %v369 = vunpack.c.l.b16 %v157
    %v370 = vunpack.c.h.b16 %v157
    %v371 = vunpack.c.l.b16 %v158
    %v372 = vunpack.c.h.b16 %v158
    %v373 = vunpack.c.l.b16 %v159
    %v374 = vunpack.c.h.b16 %v159
    %v375 = vunpack.c.l.b16 %v160
    %v376 = vunpack.c.h.b16 %v160
    %v377 = vunpack.c.l.b16 %v161
    %v378 = vunpack.c.h.b16 %v161
    %v379 = vunpack.c.l.b16 %v162
    %v380 = vunpack.c.h.b16 %v162
    %v381 = vunpack.c.l.b16 %v163
    %v382 = vunpack.c.h.b16 %v163
    %v383 = vunpack.c.l.b16 %v164
    %v384 = vunpack.c.h.b16 %v164
    %v385 = vunpack.c.l.b16 %v165
    %v386 = vunpack.c.h.b16 %v165
    %v387 = vunpack.c.l.b16 %v166
    %v388 = vunpack.c.h.b16 %v166
    %v389 = vunpack.c.l.b16 %v167
    %v390 = vunpack.c.h.b16 %v167
    %v391 = vunpack.c.l.b16 %v168
    %v392 = vunpack.c.h.b16 %v168
    %v393 = vunpack.c.l.b16 %v169
    %v394 = vunpack.c.h.b16 %v169
    %v395 = vunpack.c.l.b16 %v170
    %v396 = vunpack.c.h.b16 %v170
    %v397 = vunpack.c.l.b16 %v171
    %v398 = vunpack.c.h.b16 %v171
    %v399 = vunpack.c.l.b16 %v172
    %v400 = vunpack.c.h.b16 %v172
    %v401 = vunpack.c.l.b16 %v173
    %v402 = vunpack.c.h.b16 %v173
    %v403 = vunpack.c.l.b16 %v174
    %v404 = vunpack.c.h.b16 %v174
    %v405 = vunpack.c.l.b16 %v175
    %v406 = vunpack.c.h.b16 %v175
    %v407 = vunpack.c.l.b16 %v176
    %v408 = vunpack.c.h.b16 %v176
    %v409 = vunpack.c.l.b16 %v177
    %v410 = vunpack.c.h.b16 %v177
    %v411 = vunpack.c.l.b16 %v178
    %v412 = vunpack.c.h.b16 %v178
    %v413 = vunpack.c.l.b16 %v179
    %v414 = vunpack.c.h.b16 %v179
    %v415 = vunpack.c.l.b16 %v180
    %v416 = vunpack.c.h.b16 %v180
    %v417 = vunpack.c.l.b16 %v181
    %v418 = vunpack.c.h.b16 %v181
    %v419 = vunpack.c.l.b16 %v182
    %v420 = vunpack.c.h.b16 %v182
    %v421 = vunpack.c.l.b16 %v183
    %v422 = vunpack.c.h.b16 %v183
    %v423 = vunpack.c.l.b16 %v184
    %v424 = vunpack.c.h.b16 %v184
    %v425 = vunpack.c.l.b16 %v185
    %v426 = vunpack.c.h.b16 %v185
    %v427 = vunpack.c.l.b16 %v186
    %v428 = vunpack.c.h.b16 %v186
    %v429 = vunpack.c.l.b16 %v187
    %v430 = vunpack.c.h.b16 %v187
    %v431 = vunpack.c.l.b16 %v188
    %v432 = vunpack.c.h.b16 %v188
    %v433 = vunpack.c.l.b16 %v189
    %v434 = vunpack.c.h.b16 %v189
    %v435 = vunpack.c.l.b16 %v190
    %v436 = vunpack.c.h.b16 %v190
    %v437 = vunpack.c.l.b16 %v191
    %v438 = vunpack.c.h.b16 %v191
    %v439 = vunpack.c.l.b16 %v192
    %v440 = vunpack.c.h.b16 %v192
    %v441 = vunpack.c.l.b16 %v193
    %v442 = vunpack.c.h.b16 %v193
    %v443 = vunpack.c.l.b16 %v194
    %v444 = vunpack.c.h.b16 %v194
    %v445 = vunpack.c.l.b16 %v195
    %v446 = vunpack.c.h.b16 %v195
    %v447 = vunpack.c.l.b16 %v196
    %v448 = vunpack.c.h.b16 %v196
    %v449 = vunpack.c.l.b16 %v197
    %v450 = vunpack.c.h.b16 %v197
    %v451 = vunpack.c.l.b16 %v198
    %v452 = vunpack.c.h.b16 %v198
    %v453 = vunpack.c.l.b16 %v199
    %v454 = vunpack.c.h.b16 %v199
    %v455 = vunpack.c.l.b16 %v200
    %v456 = vunpack.c.h.b16 %v200
    %v457 = vunpack.c.l.b16 %v201
    %v458 = vunpack.c.h.b16 %v201
    %v459 = vunpack.c.l.b16 %v202
    %v460 = vunpack.c.h.b16 %v202
    %v461 = vunpack.c.l.b16 %v203
    %v462 = vunpack.c.h.b16 %v203
    %v463 = vunpack.c.l.b16 %v204
    %v464 = vunpack.c.h.b16 %v204
    %v465 = vunpack.c.l.b16 %v205
    %v466 = vunpack.c.h.b16 %v205
    %v467 = vunpack.c.l.b16 %v206
    %v468 = vunpack.c.h.b16 %v206
    %v469 = vunpack.c.l.b16 %v207
    %v470 = vunpack.c.h.b16 %v207
    %v471 = vunpack.c.l.b16 %v208
    %v472 = vunpack.c.h.b16 %v208
    %v473 = vunpack.c.l.b16 %v209
    %v474 = vunpack.c.h.b16 %v209
    %v475 = vunpack.c.l.b16 %v210
    %v476 = vunpack.c.h.b16 %v210
    %v477 = vunpack.c.l.b16 %v211
    %v478 = vunpack.c.h.b16 %v211
    %v479 = vunpack.c.l.b16 %v212
    %v480 = vunpack.c.h.b16 %v212
    %v481 = vunpack.c.l.b16 %v213
    %v482 = vunpack.c.h.b16 %v213
    %v483 = vunpack.c.l.b16 %v214
    %v484 = vunpack.c.h.b16 %v214
    %v485 = vunpack.c.l.b16 %v215
    %v486 = vunpack.c.h.b16 %v215
    %v487 = vunpack.c.l.b16 %v216
    %v488 = vunpack.c.h.b16 %v216
    %v489 = vunpack.c.l.b16 %v217
    %v490 = vunpack.c.h.b16 %v217
    %v491 = vunpack.c.l.b16 %v218
    %v492 = vunpack.c.h.b16 %v218
    %v493 = vunpack.c.l.b16 %v219
    %v494 = vunpack.c.h.b16 %v219
    %v495 = vunpack.c.l.b16 %v220
    %v496 = vunpack.c.h.b16 %v220
    %v497 = vunpack.c.l.b16 %v221
    %v498 = vunpack.c.h.b16 %v221
    %v499 = vunpack.c.l.b16 %v222
    %v500 = vunpack.c.h.b16 %v222
    %v501 = vunpack.c.l.b16 %v223
    %v502 = vunpack.c.h.b16 %v223
    %v503 = vunpack.c.l.b16 %v224
    %v504 = vunpack.c.h.b16 %v224
    %v505 = vunpack.c.l.b16 %v225
    %v506 = vunpack.c.h.b16 %v225
    %v507 = vunpack.c.l.b16 %v226
    %v508 = vunpack.c.h.b16 %v226
    %v509 = vunpack.c.l.b16 %v227
    %v510 = vunpack.c.h.b16 %v227
    %v511 = vunpack.c.l.b16 %v228
    %v512 = vunpack.c.h.b16 %v228
    %v513 = vunpack.c.l.b16 %v229
    %v514 = vunpack.c.h.b16 %v229
    %v515 = vunpack.c.l.b16 %v230
    %v516 = vunpack.c.h.b16 %v230
    %v517 = vunpack.c.l.b16 %v231
    %v518 = vunpack.c.h.b16 %v231
    %v519 = vunpack.c.l.b16 %v232
    %v520 = vunpack.c.h.b16 %v232
    %v521 = vpack.c.b16 %v333, %v329
    %v522 = vpack.c.b16 %v334, %v330
    %v523 = vpack.c.b16 %v335, %v331
    %v524 = vpack.c.b16 %v336, %v332
    %v525 = vpack.c.b16 %v341, %v337
    %v526 = vpack.c.b16 %v342, %v338
    %v527 = vpack.c.b16 %v343, %v339
    %v528 = vpack.c.b16 %v344, %v340
    %v529 = vpack.c.b16 %v349, %v345
    %v530 = vpack.c.b16 %v350, %v346
    %v531 = vpack.c.b16 %v351, %v347
    %v532 = vpack.c.b16 %v352, %v348
    %v533 = vpack.c.b16 %v357, %v353
    %v534 = vpack.c.b16 %v358, %v354
    %v535 = vpack.c.b16 %v359, %v355
    %v536 = vpack.c.b16 %v360, %v356
    %v537 = vpack.c.b16 %v365, %v361
    %v538 = vpack.c.b16 %v366, %v362
    %v539 = vpack.c.b16 %v367, %v363
    %v540 = vpack.c.b16 %v368, %v364
    %v541 = vpack.c.b16 %v373, %v369
    %v542 = vpack.c.b16 %v374, %v370
    %v543 = vpack.c.b16 %v375, %v371
    %v544 = vpack.c.b16 %v376, %v372
    %v545 = vpack.c.b16 %v381, %v377
    %v546 = vpack.c.b16 %v382, %v378
    %v547 = vpack.c.b16 %v383, %v379
    %v548 = vpack.c.b16 %v384, %v380
    %v549 = vpack.c.b16 %v389, %v385
    %v550 = vpack.c.b16 %v390, %v386
    %v551 = vpack.c.b16 %v391, %v387
    %v552 = vpack.c.b16 %v392, %v388
    %v553 = vpack.c.b16 %v397, %v393
    %v554 = vpack.c.b16 %v398, %v394
    %v555 = vpack.c.b16 %v399, %v395
    %v556 = vpack.c.b16 %v400, %v396
    %v557 = vpack.c.b16 %v405, %v401
    %v558 = vpack.c.b16 %v406, %v402
    %v559 = vpack.c.b16 %v407, %v403
    %v560 = vpack.c.b16 %v408, %v404
    %v561 = vpack.c.b16 %v413, %v409
    %v562 = vpack.c.b16 %v414, %v410
    %v563 = vpack.c.b16 %v415, %v411
    %v564 = vpack.c.b16 %v416, %v412
    %v565 = vpack.c.b16 %v421, %v417
    %v566 = vpack.c.b16 %v422, %v418
    %v567 = vpack.c.b16 %v423, %v419
    %v568 = vpack.c.b16 %v424, %v420
    %v569 = vpack.c.b16 %v429, %v425
    %v570 = vpack.c.b16 %v430, %v426
    %v571 = vpack.c.b16 %v431, %v427
    %v572 = vpack.c.b16 %v432, %v428
    %v573 = vpack.c.b16 %v437, %v433
    %v574 = vpack.c.b16 %v438, %v434
    %v575 = vpack.c.b16 %v439, %v435
    %v576 = vpack.c.b16 %v440, %v436
    %v577 = vpack.c.b16 %v445, %v441
    %v578 = vpack.c.b16 %v446, %v442
    %v579 = vpack.c.b16 %v447, %v443
    %v580 = vpack.c.b16 %v448, %v444
    %v581 = vpack.c.b16 %v453, %v449
    %v582 = vpack.c.b16 %v454, %v450
    %v583 = vpack.c.b16 %v455, %v451
    %v584 = vpack.c.b16 %v456, %v452
    %v585 = vpack.c.b16 %v461, %v457
    %v586 = vpack.c.b16 %v462, %v458
    %v587 = vpack.c.b16 %v463, %v459
    %v588 = vpack.c.b16 %v464, %v460
    %v589 = vpack.c.b16 %v469, %v465
    %v590 = vpack.c.b16 %v470, %v466
    %v591 = vpack.c.b16 %v471, %v467
    %v592 = vpack.c.b16 %v472, %v468
    %v593 = vpack.c.b16 %v477, %v473
    %v594 = vpack.c.b16 %v478, %v474
    %v595 = vpack.c.b16 %v479, %v475
    %v596 = vpack.c.b16 %v480, %v476
    %v597 = vpack.c.b16 %v485, %v481
    %v598 = vpack.c.b16 %v486, %v482
    %v599 = vpack.c.b16 %v487, %v483
    %v600 = vpack.c.b16 %v488, %v484
    %v601 = vpack.c.b16 %v493, %v489
    %v602 = vpack.c.b16 %v494, %v490
    %v603 = vpack.c.b16 %v495, %v491
    %v604 = vpack.c.b16 %v496, %v492
    %v605 = vpack.c.b16 %v501, %v497
    %v606 = vpack.c.b16 %v502, %v498
    %v607 = vpack.c.b16 %v503, %v499
    %v608 = vpack.c.b16 %v504, %v500
    %v609 = vpack.c.b16 %v509, %v505
    %v610 = vpack.c.b16 %v510, %v506
    %v611 = vpack.c.b16 %v511, %v507
    %v612 = vpack.c.b16 %v512, %v508
    %v613 = vpack.c.b16 %v517, %v513
    %v614 = vpack.c.b16 %v518, %v514
    %v615 = vpack.c.b16 %v519, %v515
    %v616 = vpack.c.b16 %v520, %v516
    %713 = vmatpush.bf16.msra.mxu0 %v549
    %714 = vmatpush.bf16.msra.mxu0 %v545
    %715 = vmatpush.bf16.msra.mxu0 %v541
    %716 = vmatpush.bf16.msra.mxu0 %v537
    %717 = vmatpush.bf16.msra.mxu0 %v533
    %718 = vmatpush.bf16.msra.mxu0 %v529
    %719 = vmatpush.bf16.msra.mxu0 %v525
    %720 = vmatpush.bf16.msra.mxu0 %v521
    %721 = vmatmul.bf16.gmra.mxu0 %v131
    %v722 = vpop.f32.mrf.mxu0
    %v723 = vadd.f32 0.0, %v722
    %v724 = vpop.f32.mrf.mxu0
    %v725 = vadd.f32 0.0, %v724
    %726 = vmatmul.bf16.gmra.mxu0 %v134
    %v727 = vpop.f32.mrf.mxu0
    %v728 = vadd.f32 0.0, %v727
    %v729 = vpop.f32.mrf.mxu0
    %v730 = vadd.f32 0.0, %v729
    %731 = vdwg.mxu0
    %732 = vmatpush.bf16.msra.mxu0 %v581
    %733 = vmatpush.bf16.msra.mxu0 %v577
    %734 = vmatpush.bf16.msra.mxu0 %v573
    %735 = vmatpush.bf16.msra.mxu0 %v569
    %736 = vmatpush.bf16.msra.mxu0 %v565
    %737 = vmatpush.bf16.msra.mxu0 %v561
    %738 = vmatpush.bf16.msra.mxu0 %v557
    %739 = vmatpush.bf16.msra.mxu0 %v553
    %740 = vmatmul.bf16.gmra.mxu0 %v132
    %v741 = vpop.f32.mrf.mxu0
    %v742 = vadd.f32 %v723, %v741
    %v743 = vpop.f32.mrf.mxu0
    %v744 = vadd.f32 %v725, %v743
    %745 = vmatmul.bf16.gmra.mxu0 %v135
    %v746 = vpop.f32.mrf.mxu0
    %v747 = vadd.f32 %v728, %v746
    %v748 = vpop.f32.mrf.mxu0
    %v749 = vadd.f32 %v730, %v748
    %750 = vdwg.mxu0
    %751 = vmatpush.bf16.msra.mxu0 %v613
    %752 = vmatpush.bf16.msra.mxu0 %v609
    %753 = vmatpush.bf16.msra.mxu0 %v605
    %754 = vmatpush.bf16.msra.mxu0 %v601
    %755 = vmatpush.bf16.msra.mxu0 %v597
    %756 = vmatpush.bf16.msra.mxu0 %v593
    %757 = vmatpush.bf16.msra.mxu0 %v589
    %758 = vmatpush.bf16.msra.mxu0 %v585
    %759 = vmatmul.bf16.gmra.mxu0 %v133
    %v760 = vpop.f32.mrf.mxu0
    %v761 = vadd.f32 %v742, %v760
    %v762 = vpop.f32.mrf.mxu0
    %v763 = vadd.f32 %v744, %v762
    %764 = vmatmul.bf16.gmra.mxu0 %v136
    %v765 = vpop.f32.mrf.mxu0
    %v766 = vadd.f32 %v747, %v765
    %v767 = vpop.f32.mrf.mxu0
    %v768 = vadd.f32 %v749, %v767
    %769 = vdwg.mxu0
    %770 = vmatpush.bf16.msra.mxu0 %v550
    %771 = vmatpush.bf16.msra.mxu0 %v546
    %772 = vmatpush.bf16.msra.mxu0 %v542
    %773 = vmatpush.bf16.msra.mxu0 %v538
    %774 = vmatpush.bf16.msra.mxu0 %v534
    %775 = vmatpush.bf16.msra.mxu0 %v530
    %776 = vmatpush.bf16.msra.mxu0 %v526
    %777 = vmatpush.bf16.msra.mxu0 %v522
    %778 = vmatmul.bf16.gmra.mxu0 %v131
    %v779 = vpop.f32.mrf.mxu0
    %v780 = vadd.f32 0.0, %v779
    %v781 = vpop.f32.mrf.mxu0
    %v782 = vadd.f32 0.0, %v781
    %783 = vmatmul.bf16.gmra.mxu0 %v134
    %v784 = vpop.f32.mrf.mxu0
    %v785 = vadd.f32 0.0, %v784
    %v786 = vpop.f32.mrf.mxu0
    %v787 = vadd.f32 0.0, %v786
    %788 = vdwg.mxu0
    %789 = vmatpush.bf16.msra.mxu0 %v582
    %790 = vmatpush.bf16.msra.mxu0 %v578
    %791 = vmatpush.bf16.msra.mxu0 %v574
    %792 = vmatpush.bf16.msra.mxu0 %v570
    %793 = vmatpush.bf16.msra.mxu0 %v566
    %794 = vmatpush.bf16.msra.mxu0 %v562
    %795 = vmatpush.bf16.msra.mxu0 %v558
    %796 = vmatpush.bf16.msra.mxu0 %v554
    %797 = vmatmul.bf16.gmra.mxu0 %v132
    %v798 = vpop.f32.mrf.mxu0
    %v799 = vadd.f32 %v780, %v798
    %v800 = vpop.f32.mrf.mxu0
    %v801 = vadd.f32 %v782, %v800
    %802 = vmatmul.bf16.gmra.mxu0 %v135
    %v803 = vpop.f32.mrf.mxu0
    %v804 = vadd.f32 %v785, %v803
    %v805 = vpop.f32.mrf.mxu0
    %v806 = vadd.f32 %v787, %v805
    %807 = vdwg.mxu0
    %808 = vmatpush.bf16.msra.mxu0 %v614
    %809 = vmatpush.bf16.msra.mxu0 %v610
    %810 = vmatpush.bf16.msra.mxu0 %v606
    %811 = vmatpush.bf16.msra.mxu0 %v602
    %812 = vmatpush.bf16.msra.mxu0 %v598
    %813 = vmatpush.bf16.msra.mxu0 %v594
    %814 = vmatpush.bf16.msra.mxu0 %v590
    %815 = vmatpush.bf16.msra.mxu0 %v586
    %816 = vmatmul.bf16.gmra.mxu0 %v133
    %v817 = vpop.f32.mrf.mxu0
    %v818 = vadd.f32 %v799, %v817
    %v819 = vpop.f32.mrf.mxu0
    %v820 = vadd.f32 %v801, %v819
    %821 = vmatmul.bf16.gmra.mxu0 %v136
    %v822 = vpop.f32.mrf.mxu0
    %v823 = vadd.f32 %v804, %v822
    %v824 = vpop.f32.mrf.mxu0
    %v825 = vadd.f32 %v806, %v824
    %826 = vdwg.mxu0
    %827 = vmatpush.bf16.msra.mxu0 %v551
    %828 = vmatpush.bf16.msra.mxu0 %v547
    %829 = vmatpush.bf16.msra.mxu0 %v543
    %830 = vmatpush.bf16.msra.mxu0 %v539
    %831 = vmatpush.bf16.msra.mxu0 %v535
    %832 = vmatpush.bf16.msra.mxu0 %v531
    %833 = vmatpush.bf16.msra.mxu0 %v527
    %834 = vmatpush.bf16.msra.mxu0 %v523
    %835 = vmatmul.bf16.gmra.mxu0 %v131
    %v836 = vpop.f32.mrf.mxu0
    %v837 = vadd.f32 0.0, %v836
    %v838 = vpop.f32.mrf.mxu0
    %v839 = vadd.f32 0.0, %v838
    %840 = vmatmul.bf16.gmra.mxu0 %v134
    %v841 = vpop.f32.mrf.mxu0
    %v842 = vadd.f32 0.0, %v841
    %v843 = vpop.f32.mrf.mxu0
    %v844 = vadd.f32 0.0, %v843
    %845 = vdwg.mxu0
    %846 = vmatpush.bf16.msra.mxu0 %v583
    %847 = vmatpush.bf16.msra.mxu0 %v579
    %848 = vmatpush.bf16.msra.mxu0 %v575
    %849 = vmatpush.bf16.msra.mxu0 %v571
    %850 = vmatpush.bf16.msra.mxu0 %v567
    %851 = vmatpush.bf16.msra.mxu0 %v563
    %852 = vmatpush.bf16.msra.mxu0 %v559
    %853 = vmatpush.bf16.msra.mxu0 %v555
    %854 = vmatmul.bf16.gmra.mxu0 %v132
    %v855 = vpop.f32.mrf.mxu0
    %v856 = vadd.f32 %v837, %v855
    %v857 = vpop.f32.mrf.mxu0
    %v858 = vadd.f32 %v839, %v857
    %859 = vmatmul.bf16.gmra.mxu0 %v135
    %v860 = vpop.f32.mrf.mxu0
    %v861 = vadd.f32 %v842, %v860
    %v862 = vpop.f32.mrf.mxu0
    %v863 = vadd.f32 %v844, %v862
    %864 = vdwg.mxu0
    %865 = vmatpush.bf16.msra.mxu0 %v615
    %866 = vmatpush.bf16.msra.mxu0 %v611
    %867 = vmatpush.bf16.msra.mxu0 %v607
    %868 = vmatpush.bf16.msra.mxu0 %v603
    %869 = vmatpush.bf16.msra.mxu0 %v599
    %870 = vmatpush.bf16.msra.mxu0 %v595
    %871 = vmatpush.bf16.msra.mxu0 %v591
    %872 = vmatpush.bf16.msra.mxu0 %v587
    %873 = vmatmul.bf16.gmra.mxu0 %v133
    %v874 = vpop.f32.mrf.mxu0
    %v875 = vadd.f32 %v856, %v874
    %v876 = vpop.f32.mrf.mxu0
    %v877 = vadd.f32 %v858, %v876
    %878 = vmatmul.bf16.gmra.mxu0 %v136
    %v879 = vpop.f32.mrf.mxu0
    %v880 = vadd.f32 %v861, %v879
    %v881 = vpop.f32.mrf.mxu0
    %v882 = vadd.f32 %v863, %v881
    %883 = vdwg.mxu0
    %884 = vmatpush.bf16.msra.mxu0 %v552
    %885 = vmatpush.bf16.msra.mxu0 %v548
    %886 = vmatpush.bf16.msra.mxu0 %v544
    %887 = vmatpush.bf16.msra.mxu0 %v540
    %888 = vmatpush.bf16.msra.mxu0 %v536
    %889 = vmatpush.bf16.msra.mxu0 %v532
    %890 = vmatpush.bf16.msra.mxu0 %v528
    %891 = vmatpush.bf16.msra.mxu0 %v524
    %892 = vmatmul.bf16.gmra.mxu0 %v131
    %v893 = vpop.f32.mrf.mxu0
    %v894 = vadd.f32 0.0, %v893
    %v895 = vpop.f32.mrf.mxu0
    %v896 = vadd.f32 0.0, %v895
    %897 = vmatmul.bf16.gmra.mxu0 %v134
    %v898 = vpop.f32.mrf.mxu0
    %v899 = vadd.f32 0.0, %v898
    %v900 = vpop.f32.mrf.mxu0
    %v901 = vadd.f32 0.0, %v900
    %902 = vdwg.mxu0
    %903 = vmatpush.bf16.msra.mxu0 %v584
    %904 = vmatpush.bf16.msra.mxu0 %v580
    %905 = vmatpush.bf16.msra.mxu0 %v576
    %906 = vmatpush.bf16.msra.mxu0 %v572
    %907 = vmatpush.bf16.msra.mxu0 %v568
    %908 = vmatpush.bf16.msra.mxu0 %v564
    %909 = vmatpush.bf16.msra.mxu0 %v560
    %910 = vmatpush.bf16.msra.mxu0 %v556
    %911 = vmatmul.bf16.gmra.mxu0 %v132
    %v912 = vpop.f32.mrf.mxu0
    %v913 = vadd.f32 %v894, %v912
    %v914 = vpop.f32.mrf.mxu0
    %v915 = vadd.f32 %v896, %v914
    %916 = vmatmul.bf16.gmra.mxu0 %v135
    %v917 = vpop.f32.mrf.mxu0
    %v918 = vadd.f32 %v899, %v917
    %v919 = vpop.f32.mrf.mxu0
    %v920 = vadd.f32 %v901, %v919
    %921 = vdwg.mxu0
    %922 = vmatpush.bf16.msra.mxu0 %v616
    %923 = vmatpush.bf16.msra.mxu0 %v612
    %924 = vmatpush.bf16.msra.mxu0 %v608
    %925 = vmatpush.bf16.msra.mxu0 %v604
    %926 = vmatpush.bf16.msra.mxu0 %v600
    %927 = vmatpush.bf16.msra.mxu0 %v596
    %928 = vmatpush.bf16.msra.mxu0 %v592
    %929 = vmatpush.bf16.msra.mxu0 %v588
    %930 = vmatmul.bf16.gmra.mxu0 %v133
    %v931 = vpop.f32.mrf.mxu0
    %v932 = vadd.f32 %v913, %v931
    %v933 = vpop.f32.mrf.mxu0
    %v934 = vadd.f32 %v915, %v933
    %935 = vmatmul.bf16.gmra.mxu0 %v136
    %v936 = vpop.f32.mrf.mxu0
    %v937 = vadd.f32 %v918, %v936
    %v938 = vpop.f32.mrf.mxu0
    %v939 = vadd.f32 %v920, %v938
    %940 = vdwg.mxu0
    %v941 = vmax.f32 %v761, 0.0
    %v942 = vmax.f32 %v818, 0.0
    %v943 = vmax.f32 %v763, 0.0
    %v944 = vmax.f32 %v820, 0.0
    %v945 = vmax.f32 %v766, 0.0
    %v946 = vmax.f32 %v823, 0.0
    %v947 = vmax.f32 %v768, 0.0
    %v948 = vmax.f32 %v825, 0.0
    %v949 = vmax.f32 %v875, 0.0
    %v950 = vmax.f32 %v932, 0.0
    %v951 = vmax.f32 %v877, 0.0
    %v952 = vmax.f32 %v934, 0.0
    %v953 = vmax.f32 %v880, 0.0
    %v954 = vmax.f32 %v937, 0.0
    %v955 = vmax.f32 %v882, 0.0
    %v956 = vmax.f32 %v939, 0.0
    %v957 = vadd.f32 %v941, %v949
    %v958 = vadd.f32 %v942, %v950
    %v959 = vadd.f32 %v943, %v951
    %v960 = vadd.f32 %v944, %v952
    %v961 = vadd.f32 %v945, %v953
    %v962 = vadd.f32 %v946, %v954
    %v963 = vadd.f32 %v947, %v955
    %v964 = vadd.f32 %v948, %v956
    %v965 = vadd.f32 %v957, %v959
    %v966 = vadd.f32 %v965, %v961
    %v967 = vadd.f32 %v966, %v963
    %v968 = vrot.slane %v967, 4
    %v969 = vadd.f32 %v967, %v968
    %v970 = vrot.slane %v969, 2
    %v971 = vadd.f32 %v969, %v970
    %v972 = vrot.slane %v971, 1
    %v973 = vadd.f32 %v971, %v972
    %v974 = vadd.f32 %v958, %v960
    %v975 = vadd.f32 %v974, %v962
    %v976 = vadd.f32 %v975, %v964
    %v977 = vrot.slane %v976, 4
    %v978 = vadd.f32 %v976, %v977
    %v979 = vrot.slane %v978, 2
    %v980 = vadd.f32 %v978, %v979
    %v981 = vrot.slane %v980, 1
    %v982 = vadd.f32 %v980, %v981
    %v983 = vadd.f32 %v973, %v982
    %984 = vrot.lane.b32.xlu0 %v983, 64
    %v985 = vpop.permute.xlu0 %984
    %v986 = vlaneseq
    %v987 = vand.u32 %v986, 127
    %v988 = vadd.f32 %v983, %v985
    %989 = vrot.lane.b32.xlu0 %v988, 32
    %v990 = vpop.permute.xlu0 %989
    %v991 = vadd.f32 %v988, %v990
    %992 = vrot.lane.b32.xlu0 %v991, 16
    %v993 = vpop.permute.xlu0 %992
    %v994 = vadd.f32 %v991, %v993
    %v995 = vmul.f32 %v994, 0.001953125
    %v996 = vperm.slane %v995, 0
    %v997 = vsub.f32 %v957, %v996
    %v998 = vsub.f32 %v958, %v996
    %v999 = vsub.f32 %v959, %v996
    %v1000 = vsub.f32 %v960, %v996
    %v1001 = vsub.f32 %v961, %v996
    %v1002 = vsub.f32 %v962, %v996
    %v1003 = vsub.f32 %v963, %v996
    %v1004 = vsub.f32 %v964, %v996
    %v1005 = vmul.f32 %v997, %v997
    %v1006 = vmul.f32 %v998, %v998
    %v1007 = vmul.f32 %v999, %v999
    %v1008 = vmul.f32 %v1000, %v1000
    %v1009 = vmul.f32 %v1001, %v1001
    %v1010 = vmul.f32 %v1002, %v1002
    %v1011 = vmul.f32 %v1003, %v1003
    %v1012 = vmul.f32 %v1004, %v1004
    %v1013 = vadd.f32 %v1005, %v1007
    %v1014 = vadd.f32 %v1013, %v1009
    %v1015 = vadd.f32 %v1014, %v1011
    %v1016 = vrot.slane %v1015, 4
    %v1017 = vadd.f32 %v1015, %v1016
    %v1018 = vrot.slane %v1017, 2
    %v1019 = vadd.f32 %v1017, %v1018
    %v1020 = vrot.slane %v1019, 1
    %v1021 = vadd.f32 %v1019, %v1020
    %v1022 = vadd.f32 %v1006, %v1008
    %v1023 = vadd.f32 %v1022, %v1010
    %v1024 = vadd.f32 %v1023, %v1012
    %v1025 = vrot.slane %v1024, 4
    %v1026 = vadd.f32 %v1024, %v1025
    %v1027 = vrot.slane %v1026, 2
    %v1028 = vadd.f32 %v1026, %v1027
    %v1029 = vrot.slane %v1028, 1
    %v1030 = vadd.f32 %v1028, %v1029
    %v1031 = vadd.f32 %v1021, %v1030
    %1032 = vrot.lane.b32.xlu0 %v1031, 64
    %v1033 = vpop.permute.xlu0 %1032
    %v1034 = vadd.f32 %v1031, %v1033
    %1035 = vrot.lane.b32.xlu0 %v1034, 32
    %v1036 = vpop.permute.xlu0 %1035
    %v1037 = vadd.f32 %v1034, %v1036
    %1038 = vrot.lane.b32.xlu0 %v1037, 16
    %v1039 = vpop.permute.xlu0 %1038
    %v1040 = vadd.f32 %v1037, %v1039
    %v1041 = vmul.f32 %v1040, 0.001953125
    %v1042 = vld [vmem:[%s3] sm:$0x3]
    %v1043 = vadd.f32 %v1041, 1e-05
    %v1044 = vrsqrt.pop %v1043
    %v1045 = vmul.f32 %v1044, %v1043
    %v1046 = vmul.f32 %v1045, %v1044
    %v1047 = vmul.f32 0.5, %v1046
    %v1048 = vsub.f32 1.5, %v1047
    %v1049 = vmul.f32 %v1044, %v1048
    %vm1050 = vweird.f32 %v1043
    %vm1051 = vweird.f32 %v1044
    %vm1052 = vmor %vm1050, %vm1051
    %v1053 = vsel %vm1052, %v1044, %v1049
    %v1055 = vrot.slane %v1053, 7
    %vm1056 = vcmask 1040384
    %v1057 = vsel %vm1056, %v1053, %v1055
    %v1059 = vmul.f32 %v1042, %v1057
    %v1060 = vld [vmem:[%s4] sm:$0x3]
    %v1062 = vperm.slane %v1059, 0
    %v1063 = vperm.slane %v1059, 1
    %v1066 = vmul.f32 %v995, %v1062
    %v1067 = vmul.f32 %v995, %v1063
    %v1070 = vrot.slane %v1067, 7
    %v1071 = vsel %vm1056, %v1066, %v1070
    %v1073 = vsub.f32 %v1060, %v1071
    %v1074 = vmul.f32 %v957, %v1062
    %v1075 = vmul.f32 %v958, %v1063
    %v1076 = vmul.f32 %v959, %v1062
    %v1077 = vmul.f32 %v960, %v1063
    %v1078 = vmul.f32 %v961, %v1062
    %v1079 = vmul.f32 %v962, %v1063
    %v1080 = vmul.f32 %v963, %v1062
    %v1081 = vmul.f32 %v964, %v1063
    %v1083 = vperm.slane %v1073, 0
    %v1084 = vperm.slane %v1073, 1
    %v1087 = vadd.f32 %v1074, %v1083
    %v1088 = vadd.f32 %v1075, %v1084
    %v1089 = vadd.f32 %v1076, %v1083
    %v1090 = vadd.f32 %v1077, %v1084
    %v1091 = vadd.f32 %v1078, %v1083
    %v1092 = vadd.f32 %v1079, %v1084
    %v1093 = vadd.f32 %v1080, %v1083
    %v1094 = vadd.f32 %v1081, %v1084
    %v1095 = vmax.f32 %v1087, 0.0
    %v1096 = vmax.f32 %v1088, 0.0
    %v1097 = vmax.f32 %v1089, 0.0
    %v1098 = vmax.f32 %v1090, 0.0
    %v1099 = vmax.f32 %v1091, 0.0
    %v1100 = vmax.f32 %v1092, 0.0
    %v1101 = vmax.f32 %v1093, 0.0
    %v1102 = vmax.f32 %v1094, 0.0
    %v1103 = vld [vmem:[#allocation2] sm:$0xff]
    %v1104 = vld [vmem:[#allocation2 + $0x8] sm:$0xff]
    %v1105 = vld [vmem:[#allocation2 + $0x10] sm:$0xff]
    %v1106 = vld [vmem:[#allocation2 + $0x18] sm:$0xff]
    %v1107 = vld [vmem:[#allocation2 + $0x20] sm:$0xff]
    %v1108 = vld [vmem:[#allocation2 + $0x28] sm:$0xff]
    %v1109 = vld [vmem:[#allocation2 + $0x30] sm:$0xff]
    %v1110 = vld [vmem:[#allocation2 + $0x38] sm:$0xff]
    %v1111 = vld [vmem:[#allocation2 + $0x40] sm:$0xff]
    %v1112 = vld [vmem:[#allocation2 + $0x48] sm:$0xff]
    %v1113 = vld [vmem:[#allocation2 + $0x50] sm:$0xff]
    %v1114 = vld [vmem:[#allocation2 + $0x58] sm:$0xff]
    %v1115 = vld [vmem:[#allocation2 + $0x60] sm:$0xff]
    %v1116 = vld [vmem:[#allocation2 + $0x68] sm:$0xff]
    %v1117 = vld [vmem:[#allocation2 + $0x70] sm:$0xff]
    %v1118 = vld [vmem:[#allocation2 + $0x78] sm:$0xff]
    %v1119 = vld [vmem:[#allocation2 + $0x80] sm:$0xff]
    %v1120 = vld [vmem:[#allocation2 + $0x88] sm:$0xff]
    %v1121 = vld [vmem:[#allocation2 + $0x90] sm:$0xff]
    %v1122 = vld [vmem:[#allocation2 + $0x98] sm:$0xff]
    %v1123 = vld [vmem:[#allocation2 + $0xa0] sm:$0xff]
    %v1124 = vld [vmem:[#allocation2 + $0xa8] sm:$0xff]
    %v1125 = vld [vmem:[#allocation2 + $0xb0] sm:$0xff]
    %v1126 = vld [vmem:[#allocation2 + $0xb8] sm:$0xff]
    %v1127 = vld [vmem:[#allocation2 + $0xc0] sm:$0xff]
    %v1128 = vld [vmem:[#allocation2 + $0xc8] sm:$0xff]
    %v1129 = vld [vmem:[#allocation2 + $0xd0] sm:$0xff]
    %v1130 = vld [vmem:[#allocation2 + $0xd8] sm:$0xff]
    %v1131 = vld [vmem:[#allocation2 + $0xe0] sm:$0xff]
    %v1132 = vld [vmem:[#allocation2 + $0xe8] sm:$0xff]
    %v1133 = vld [vmem:[#allocation2 + $0xf0] sm:$0xff]
    %v1134 = vld [vmem:[#allocation2 + $0xf8] sm:$0xff]
    %v1135 = vld [vmem:[#allocation2 + $0x100] sm:$0xff]
    %v1136 = vld [vmem:[#allocation2 + $0x108] sm:$0xff]
    %v1137 = vld [vmem:[#allocation2 + $0x110] sm:$0xff]
    %v1138 = vld [vmem:[#allocation2 + $0x118] sm:$0xff]
    %v1139 = vld [vmem:[#allocation2 + $0x120] sm:$0xff]
    %v1140 = vld [vmem:[#allocation2 + $0x128] sm:$0xff]
    %v1141 = vld [vmem:[#allocation2 + $0x130] sm:$0xff]
    %v1142 = vld [vmem:[#allocation2 + $0x138] sm:$0xff]
    %v1143 = vld [vmem:[#allocation2 + $0x140] sm:$0xff]
    %v1144 = vld [vmem:[#allocation2 + $0x148] sm:$0xff]
    %v1145 = vld [vmem:[#allocation2 + $0x150] sm:$0xff]
    %v1146 = vld [vmem:[#allocation2 + $0x158] sm:$0xff]
    %v1147 = vld [vmem:[#allocation2 + $0x160] sm:$0xff]
    %v1148 = vld [vmem:[#allocation2 + $0x168] sm:$0xff]
    %v1149 = vld [vmem:[#allocation2 + $0x170] sm:$0xff]
    %v1150 = vld [vmem:[#allocation2 + $0x178] sm:$0xff]
    %v1151 = vld [vmem:[#allocation2 + $0x180] sm:$0xff]
    %v1152 = vld [vmem:[#allocation2 + $0x188] sm:$0xff]
    %v1153 = vld [vmem:[#allocation2 + $0x190] sm:$0xff]
    %v1154 = vld [vmem:[#allocation2 + $0x198] sm:$0xff]
    %v1155 = vld [vmem:[#allocation2 + $0x1a0] sm:$0xff]
    %v1156 = vld [vmem:[#allocation2 + $0x1a8] sm:$0xff]
    %v1157 = vld [vmem:[#allocation2 + $0x1b0] sm:$0xff]
    %v1158 = vld [vmem:[#allocation2 + $0x1b8] sm:$0xff]
    %v1159 = vld [vmem:[#allocation2 + $0x1c0] sm:$0xff]
    %v1160 = vld [vmem:[#allocation2 + $0x1c8] sm:$0xff]
    %v1161 = vld [vmem:[#allocation2 + $0x1d0] sm:$0xff]
    %v1162 = vld [vmem:[#allocation2 + $0x1d8] sm:$0xff]
    %v1163 = vld [vmem:[#allocation2 + $0x1e0] sm:$0xff]
    %v1164 = vld [vmem:[#allocation2 + $0x1e8] sm:$0xff]
    %v1165 = vld [vmem:[#allocation2 + $0x1f0] sm:$0xff]
    %v1166 = vld [vmem:[#allocation2 + $0x1f8] sm:$0xff]
    %v1167 = vld [vmem:[#allocation2 + $0x200] sm:$0xff]
    %v1168 = vld [vmem:[#allocation2 + $0x208] sm:$0xff]
    %v1169 = vld [vmem:[#allocation2 + $0x210] sm:$0xff]
    %v1170 = vld [vmem:[#allocation2 + $0x218] sm:$0xff]
    %v1171 = vld [vmem:[#allocation2 + $0x220] sm:$0xff]
    %v1172 = vld [vmem:[#allocation2 + $0x228] sm:$0xff]
    %v1173 = vld [vmem:[#allocation2 + $0x230] sm:$0xff]
    %v1174 = vld [vmem:[#allocation2 + $0x238] sm:$0xff]
    %v1175 = vld [vmem:[#allocation2 + $0x240] sm:$0xff]
    %v1176 = vld [vmem:[#allocation2 + $0x248] sm:$0xff]
    %v1177 = vld [vmem:[#allocation2 + $0x250] sm:$0xff]
    %v1178 = vld [vmem:[#allocation2 + $0x258] sm:$0xff]
    %v1179 = vld [vmem:[#allocation2 + $0x260] sm:$0xff]
    %v1180 = vld [vmem:[#allocation2 + $0x268] sm:$0xff]
    %v1181 = vld [vmem:[#allocation2 + $0x270] sm:$0xff]
    %v1182 = vld [vmem:[#allocation2 + $0x278] sm:$0xff]
    %v1183 = vld [vmem:[#allocation2 + $0x280] sm:$0xff]
    %v1184 = vld [vmem:[#allocation2 + $0x288] sm:$0xff]
    %v1185 = vld [vmem:[#allocation2 + $0x290] sm:$0xff]
    %v1186 = vld [vmem:[#allocation2 + $0x298] sm:$0xff]
    %v1187 = vld [vmem:[#allocation2 + $0x2a0] sm:$0xff]
    %v1188 = vld [vmem:[#allocation2 + $0x2a8] sm:$0xff]
    %v1189 = vld [vmem:[#allocation2 + $0x2b0] sm:$0xff]
    %v1190 = vld [vmem:[#allocation2 + $0x2b8] sm:$0xff]
    %v1191 = vld [vmem:[#allocation2 + $0x2c0] sm:$0xff]
    %v1192 = vld [vmem:[#allocation2 + $0x2c8] sm:$0xff]
    %v1193 = vld [vmem:[#allocation2 + $0x2d0] sm:$0xff]
    %v1194 = vld [vmem:[#allocation2 + $0x2d8] sm:$0xff]
    %v1195 = vld [vmem:[#allocation2 + $0x2e0] sm:$0xff]
    %v1196 = vld [vmem:[#allocation2 + $0x2e8] sm:$0xff]
    %v1197 = vld [vmem:[#allocation2 + $0x2f0] sm:$0xff]
    %v1198 = vld [vmem:[#allocation2 + $0x2f8] sm:$0xff]
    %v1199 = vld [vmem:[#allocation2 + $0x300] sm:$0xff]
    %v1200 = vld [vmem:[#allocation2 + $0x308] sm:$0xff]
    %v1201 = vld [vmem:[#allocation2 + $0x310] sm:$0xff]
    %v1202 = vld [vmem:[#allocation2 + $0x318] sm:$0xff]
    %v1203 = vld [vmem:[#allocation2 + $0x320] sm:$0xff]
    %v1204 = vld [vmem:[#allocation2 + $0x328] sm:$0xff]
    %v1205 = vld [vmem:[#allocation2 + $0x330] sm:$0xff]
    %v1206 = vld [vmem:[#allocation2 + $0x338] sm:$0xff]
    %v1207 = vld [vmem:[#allocation2 + $0x340] sm:$0xff]
    %v1208 = vld [vmem:[#allocation2 + $0x348] sm:$0xff]
    %v1209 = vld [vmem:[#allocation2 + $0x350] sm:$0xff]
    %v1210 = vld [vmem:[#allocation2 + $0x358] sm:$0xff]
    %v1211 = vld [vmem:[#allocation2 + $0x360] sm:$0xff]
    %v1212 = vld [vmem:[#allocation2 + $0x368] sm:$0xff]
    %v1213 = vld [vmem:[#allocation2 + $0x370] sm:$0xff]
    %v1214 = vld [vmem:[#allocation2 + $0x378] sm:$0xff]
    %v1215 = vld [vmem:[#allocation2 + $0x380] sm:$0xff]
    %v1216 = vld [vmem:[#allocation2 + $0x388] sm:$0xff]
    %v1217 = vld [vmem:[#allocation2 + $0x390] sm:$0xff]
    %v1218 = vld [vmem:[#allocation2 + $0x398] sm:$0xff]
    %v1219 = vld [vmem:[#allocation2 + $0x3a0] sm:$0xff]
    %v1220 = vld [vmem:[#allocation2 + $0x3a8] sm:$0xff]
    %v1221 = vld [vmem:[#allocation2 + $0x3b0] sm:$0xff]
    %v1222 = vld [vmem:[#allocation2 + $0x3b8] sm:$0xff]
    %v1223 = vld [vmem:[#allocation2 + $0x3c0] sm:$0xff]
    %v1224 = vld [vmem:[#allocation2 + $0x3c8] sm:$0xff]
    %v1225 = vld [vmem:[#allocation2 + $0x3d0] sm:$0xff]
    %v1226 = vld [vmem:[#allocation2 + $0x3d8] sm:$0xff]
    %v1227 = vld [vmem:[#allocation2 + $0x3e0] sm:$0xff]
    %v1228 = vld [vmem:[#allocation2 + $0x3e8] sm:$0xff]
    %v1229 = vld [vmem:[#allocation2 + $0x3f0] sm:$0xff]
    %v1230 = vld [vmem:[#allocation2 + $0x3f8] sm:$0xff]
    %v1231 = vld [vmem:[#allocation2 + $0x400] sm:$0xff]
    %v1232 = vld [vmem:[#allocation2 + $0x408] sm:$0xff]
    %v1233 = vld [vmem:[#allocation2 + $0x410] sm:$0xff]
    %v1234 = vld [vmem:[#allocation2 + $0x418] sm:$0xff]
    %v1235 = vld [vmem:[#allocation2 + $0x420] sm:$0xff]
    %v1236 = vld [vmem:[#allocation2 + $0x428] sm:$0xff]
    %v1237 = vld [vmem:[#allocation2 + $0x430] sm:$0xff]
    %v1238 = vld [vmem:[#allocation2 + $0x438] sm:$0xff]
    %v1239 = vld [vmem:[#allocation2 + $0x440] sm:$0xff]
    %v1240 = vld [vmem:[#allocation2 + $0x448] sm:$0xff]
    %v1241 = vld [vmem:[#allocation2 + $0x450] sm:$0xff]
    %v1242 = vld [vmem:[#allocation2 + $0x458] sm:$0xff]
    %v1243 = vld [vmem:[#allocation2 + $0x460] sm:$0xff]
    %v1244 = vld [vmem:[#allocation2 + $0x468] sm:$0xff]
    %v1245 = vld [vmem:[#allocation2 + $0x470] sm:$0xff]
    %v1246 = vld [vmem:[#allocation2 + $0x478] sm:$0xff]
    %v1247 = vld [vmem:[#allocation2 + $0x480] sm:$0xff]
    %v1248 = vld [vmem:[#allocation2 + $0x488] sm:$0xff]
    %v1249 = vld [vmem:[#allocation2 + $0x490] sm:$0xff]
    %v1250 = vld [vmem:[#allocation2 + $0x498] sm:$0xff]
    %v1251 = vld [vmem:[#allocation2 + $0x4a0] sm:$0xff]
    %v1252 = vld [vmem:[#allocation2 + $0x4a8] sm:$0xff]
    %v1253 = vld [vmem:[#allocation2 + $0x4b0] sm:$0xff]
    %v1254 = vld [vmem:[#allocation2 + $0x4b8] sm:$0xff]
    %v1255 = vld [vmem:[#allocation2 + $0x4c0] sm:$0xff]
    %v1256 = vld [vmem:[#allocation2 + $0x4c8] sm:$0xff]
    %v1257 = vld [vmem:[#allocation2 + $0x4d0] sm:$0xff]
    %v1258 = vld [vmem:[#allocation2 + $0x4d8] sm:$0xff]
    %v1259 = vld [vmem:[#allocation2 + $0x4e0] sm:$0xff]
    %v1260 = vld [vmem:[#allocation2 + $0x4e8] sm:$0xff]
    %v1261 = vld [vmem:[#allocation2 + $0x4f0] sm:$0xff]
    %v1262 = vld [vmem:[#allocation2 + $0x4f8] sm:$0xff]
    %v1263 = vld [vmem:[#allocation2 + $0x500] sm:$0xff]
    %v1264 = vld [vmem:[#allocation2 + $0x508] sm:$0xff]
    %v1265 = vld [vmem:[#allocation2 + $0x510] sm:$0xff]
    %v1266 = vld [vmem:[#allocation2 + $0x518] sm:$0xff]
    %v1267 = vld [vmem:[#allocation2 + $0x520] sm:$0xff]
    %v1268 = vld [vmem:[#allocation2 + $0x528] sm:$0xff]
    %v1269 = vld [vmem:[#allocation2 + $0x530] sm:$0xff]
    %v1270 = vld [vmem:[#allocation2 + $0x538] sm:$0xff]
    %v1271 = vld [vmem:[#allocation2 + $0x540] sm:$0xff]
    %v1272 = vld [vmem:[#allocation2 + $0x548] sm:$0xff]
    %v1273 = vld [vmem:[#allocation2 + $0x550] sm:$0xff]
    %v1274 = vld [vmem:[#allocation2 + $0x558] sm:$0xff]
    %v1275 = vld [vmem:[#allocation2 + $0x560] sm:$0xff]
    %v1276 = vld [vmem:[#allocation2 + $0x568] sm:$0xff]
    %v1277 = vld [vmem:[#allocation2 + $0x570] sm:$0xff]
    %v1278 = vld [vmem:[#allocation2 + $0x578] sm:$0xff]
    %v1279 = vld [vmem:[#allocation2 + $0x580] sm:$0xff]
    %v1280 = vld [vmem:[#allocation2 + $0x588] sm:$0xff]
    %v1281 = vld [vmem:[#allocation2 + $0x590] sm:$0xff]
    %v1282 = vld [vmem:[#allocation2 + $0x598] sm:$0xff]
    %v1283 = vld [vmem:[#allocation2 + $0x5a0] sm:$0xff]
    %v1284 = vld [vmem:[#allocation2 + $0x5a8] sm:$0xff]
    %v1285 = vld [vmem:[#allocation2 + $0x5b0] sm:$0xff]
    %v1286 = vld [vmem:[#allocation2 + $0x5b8] sm:$0xff]
    %v1287 = vld [vmem:[#allocation2 + $0x5c0] sm:$0xff]
    %v1288 = vld [vmem:[#allocation2 + $0x5c8] sm:$0xff]
    %v1289 = vld [vmem:[#allocation2 + $0x5d0] sm:$0xff]
    %v1290 = vld [vmem:[#allocation2 + $0x5d8] sm:$0xff]
    %v1291 = vld [vmem:[#allocation2 + $0x5e0] sm:$0xff]
    %v1292 = vld [vmem:[#allocation2 + $0x5e8] sm:$0xff]
    %v1293 = vld [vmem:[#allocation2 + $0x5f0] sm:$0xff]
    %v1294 = vld [vmem:[#allocation2 + $0x5f8] sm:$0xff]
    %v1295 = vld [vmem:[#allocation2 + $0x600] sm:$0xff]
    %v1296 = vld [vmem:[#allocation2 + $0x608] sm:$0xff]
    %v1297 = vld [vmem:[#allocation2 + $0x610] sm:$0xff]
    %v1298 = vld [vmem:[#allocation2 + $0x618] sm:$0xff]
    %v1299 = vld [vmem:[#allocation2 + $0x620] sm:$0xff]
    %v1300 = vld [vmem:[#allocation2 + $0x628] sm:$0xff]
    %v1301 = vld [vmem:[#allocation2 + $0x630] sm:$0xff]
    %v1302 = vld [vmem:[#allocation2 + $0x638] sm:$0xff]
    %v1303 = vld [vmem:[#allocation2 + $0x640] sm:$0xff]
    %v1304 = vld [vmem:[#allocation2 + $0x648] sm:$0xff]
    %v1305 = vld [vmem:[#allocation2 + $0x650] sm:$0xff]
    %v1306 = vld [vmem:[#allocation2 + $0x658] sm:$0xff]
    %v1307 = vld [vmem:[#allocation2 + $0x660] sm:$0xff]
    %v1308 = vld [vmem:[#allocation2 + $0x668] sm:$0xff]
    %v1309 = vld [vmem:[#allocation2 + $0x670] sm:$0xff]
    %v1310 = vld [vmem:[#allocation2 + $0x678] sm:$0xff]
    %v1311 = vld [vmem:[#allocation2 + $0x680] sm:$0xff]
    %v1312 = vld [vmem:[#allocation2 + $0x688] sm:$0xff]
    %v1313 = vld [vmem:[#allocation2 + $0x690] sm:$0xff]
    %v1314 = vld [vmem:[#allocation2 + $0x698] sm:$0xff]
    %v1315 = vld [vmem:[#allocation2 + $0x6a0] sm:$0xff]
    %v1316 = vld [vmem:[#allocation2 + $0x6a8] sm:$0xff]
    %v1317 = vld [vmem:[#allocation2 + $0x6b0] sm:$0xff]
    %v1318 = vld [vmem:[#allocation2 + $0x6b8] sm:$0xff]
    %v1319 = vld [vmem:[#allocation2 + $0x6c0] sm:$0xff]
    %v1320 = vld [vmem:[#allocation2 + $0x6c8] sm:$0xff]
    %v1321 = vld [vmem:[#allocation2 + $0x6d0] sm:$0xff]
    %v1322 = vld [vmem:[#allocation2 + $0x6d8] sm:$0xff]
    %v1323 = vld [vmem:[#allocation2 + $0x6e0] sm:$0xff]
    %v1324 = vld [vmem:[#allocation2 + $0x6e8] sm:$0xff]
    %v1325 = vld [vmem:[#allocation2 + $0x6f0] sm:$0xff]
    %v1326 = vld [vmem:[#allocation2 + $0x6f8] sm:$0xff]
    %v1327 = vld [vmem:[#allocation2 + $0x700] sm:$0xff]
    %v1328 = vld [vmem:[#allocation2 + $0x708] sm:$0xff]
    %v1329 = vld [vmem:[#allocation2 + $0x710] sm:$0xff]
    %v1330 = vld [vmem:[#allocation2 + $0x718] sm:$0xff]
    %v1331 = vld [vmem:[#allocation2 + $0x720] sm:$0xff]
    %v1332 = vld [vmem:[#allocation2 + $0x728] sm:$0xff]
    %v1333 = vld [vmem:[#allocation2 + $0x730] sm:$0xff]
    %v1334 = vld [vmem:[#allocation2 + $0x738] sm:$0xff]
    %v1335 = vld [vmem:[#allocation2 + $0x740] sm:$0xff]
    %v1336 = vld [vmem:[#allocation2 + $0x748] sm:$0xff]
    %v1337 = vld [vmem:[#allocation2 + $0x750] sm:$0xff]
    %v1338 = vld [vmem:[#allocation2 + $0x758] sm:$0xff]
    %v1339 = vld [vmem:[#allocation2 + $0x760] sm:$0xff]
    %v1340 = vld [vmem:[#allocation2 + $0x768] sm:$0xff]
    %v1341 = vld [vmem:[#allocation2 + $0x770] sm:$0xff]
    %v1342 = vld [vmem:[#allocation2 + $0x778] sm:$0xff]
    %v1343 = vld [vmem:[#allocation2 + $0x780] sm:$0xff]
    %v1344 = vld [vmem:[#allocation2 + $0x788] sm:$0xff]
    %v1345 = vld [vmem:[#allocation2 + $0x790] sm:$0xff]
    %v1346 = vld [vmem:[#allocation2 + $0x798] sm:$0xff]
    %v1347 = vld [vmem:[#allocation2 + $0x7a0] sm:$0xff]
    %v1348 = vld [vmem:[#allocation2 + $0x7a8] sm:$0xff]
    %v1349 = vld [vmem:[#allocation2 + $0x7b0] sm:$0xff]
    %v1350 = vld [vmem:[#allocation2 + $0x7b8] sm:$0xff]
    %v1351 = vld [vmem:[#allocation2 + $0x7c0] sm:$0xff]
    %v1352 = vld [vmem:[#allocation2 + $0x7c8] sm:$0xff]
    %v1353 = vld [vmem:[#allocation2 + $0x7d0] sm:$0xff]
    %v1354 = vld [vmem:[#allocation2 + $0x7d8] sm:$0xff]
    %v1355 = vld [vmem:[#allocation2 + $0x7e0] sm:$0xff]
    %v1356 = vld [vmem:[#allocation2 + $0x7e8] sm:$0xff]
    %v1357 = vld [vmem:[#allocation2 + $0x7f0] sm:$0xff]
    %v1358 = vld [vmem:[#allocation2 + $0x7f8] sm:$0xff]
    %1359 = vmatpush.msra.mxu0 %v1223
    %1360 = vmatpush.msra.mxu0 %v1215
    %1361 = vmatpush.msra.mxu0 %v1207
    %1362 = vmatpush.msra.mxu0 %v1199
    %1363 = vmatpush.msra.mxu0 %v1191
    %1364 = vmatpush.msra.mxu0 %v1183
    %1365 = vmatpush.msra.mxu0 %v1175
    %1366 = vmatpush.msra.mxu0 %v1167
    %1367 = vmatpush.msra.mxu0 %v1159
    %1368 = vmatpush.msra.mxu0 %v1151
    %1369 = vmatpush.msra.mxu0 %v1143
    %1370 = vmatpush.msra.mxu0 %v1135
    %1371 = vmatpush.msra.mxu0 %v1127
    %1372 = vmatpush.msra.mxu0 %v1119
    %1373 = vmatpush.msra.mxu0 %v1111
    %1374 = vmatpush.msra.mxu0 %v1103
    %1375 = vmatmul.f32.gmra.mxu0 %v1095
    %v1376 = vpop.f32.mrf.mxu0
    %v1377 = vadd.f32 0.0, %v1376
    %1378 = vmatmul.f32.gmra.mxu0 %v1097
    %v1379 = vpop.f32.mrf.mxu0
    %v1380 = vadd.f32 0.0, %v1379
    %1381 = vmatmul.f32.gmra.mxu0 %v1099
    %v1382 = vpop.f32.mrf.mxu0
    %v1383 = vadd.f32 0.0, %v1382
    %1384 = vmatmul.f32.gmra.mxu0 %v1101
    %v1385 = vpop.f32.mrf.mxu0
    %v1386 = vadd.f32 0.0, %v1385
    %1387 = vdwg.mxu0
    %1388 = vmatpush.msra.mxu0 %v1351
    %1389 = vmatpush.msra.mxu0 %v1343
    %1390 = vmatpush.msra.mxu0 %v1335
    %1391 = vmatpush.msra.mxu0 %v1327
    %1392 = vmatpush.msra.mxu0 %v1319
    %1393 = vmatpush.msra.mxu0 %v1311
    %1394 = vmatpush.msra.mxu0 %v1303
    %1395 = vmatpush.msra.mxu0 %v1295
    %1396 = vmatpush.msra.mxu0 %v1287
    %1397 = vmatpush.msra.mxu0 %v1279
    %1398 = vmatpush.msra.mxu0 %v1271
    %1399 = vmatpush.msra.mxu0 %v1263
    %1400 = vmatpush.msra.mxu0 %v1255
    %1401 = vmatpush.msra.mxu0 %v1247
    %1402 = vmatpush.msra.mxu0 %v1239
    %1403 = vmatpush.msra.mxu0 %v1231
    %1404 = vmatmul.f32.gmra.mxu0 %v1096
    %v1405 = vpop.f32.mrf.mxu0
    %v1406 = vadd.f32 %v1377, %v1405
    %1407 = vmatmul.f32.gmra.mxu0 %v1098
    %v1408 = vpop.f32.mrf.mxu0
    %v1409 = vadd.f32 %v1380, %v1408
    %1410 = vmatmul.f32.gmra.mxu0 %v1100
    %v1411 = vpop.f32.mrf.mxu0
    %v1412 = vadd.f32 %v1383, %v1411
    %1413 = vmatmul.f32.gmra.mxu0 %v1102
    %v1414 = vpop.f32.mrf.mxu0
    %v1415 = vadd.f32 %v1386, %v1414
    %1416 = vdwg.mxu0
    %1417 = vmatpush.msra.mxu0 %v1224
    %1418 = vmatpush.msra.mxu0 %v1216
    %1419 = vmatpush.msra.mxu0 %v1208
    %1420 = vmatpush.msra.mxu0 %v1200
    %1421 = vmatpush.msra.mxu0 %v1192
    %1422 = vmatpush.msra.mxu0 %v1184
    %1423 = vmatpush.msra.mxu0 %v1176
    %1424 = vmatpush.msra.mxu0 %v1168
    %1425 = vmatpush.msra.mxu0 %v1160
    %1426 = vmatpush.msra.mxu0 %v1152
    %1427 = vmatpush.msra.mxu0 %v1144
    %1428 = vmatpush.msra.mxu0 %v1136
    %1429 = vmatpush.msra.mxu0 %v1128
    %1430 = vmatpush.msra.mxu0 %v1120
    %1431 = vmatpush.msra.mxu0 %v1112
    %1432 = vmatpush.msra.mxu0 %v1104
    %1433 = vmatmul.f32.gmra.mxu0 %v1095
    %v1434 = vpop.f32.mrf.mxu0
    %v1435 = vadd.f32 0.0, %v1434
    %1436 = vmatmul.f32.gmra.mxu0 %v1097
    %v1437 = vpop.f32.mrf.mxu0
    %v1438 = vadd.f32 0.0, %v1437
    %1439 = vmatmul.f32.gmra.mxu0 %v1099
    %v1440 = vpop.f32.mrf.mxu0
    %v1441 = vadd.f32 0.0, %v1440
    %1442 = vmatmul.f32.gmra.mxu0 %v1101
    %v1443 = vpop.f32.mrf.mxu0
    %v1444 = vadd.f32 0.0, %v1443
    %1445 = vdwg.mxu0
    %1446 = vmatpush.msra.mxu0 %v1352
    %1447 = vmatpush.msra.mxu0 %v1344
    %1448 = vmatpush.msra.mxu0 %v1336
    %1449 = vmatpush.msra.mxu0 %v1328
    %1450 = vmatpush.msra.mxu0 %v1320
    %1451 = vmatpush.msra.mxu0 %v1312
    %1452 = vmatpush.msra.mxu0 %v1304
    %1453 = vmatpush.msra.mxu0 %v1296
    %1454 = vmatpush.msra.mxu0 %v1288
    %1455 = vmatpush.msra.mxu0 %v1280
    %1456 = vmatpush.msra.mxu0 %v1272
    %1457 = vmatpush.msra.mxu0 %v1264
    %1458 = vmatpush.msra.mxu0 %v1256
    %1459 = vmatpush.msra.mxu0 %v1248
    %1460 = vmatpush.msra.mxu0 %v1240
    %1461 = vmatpush.msra.mxu0 %v1232
    %1462 = vmatmul.f32.gmra.mxu0 %v1096
    %v1463 = vpop.f32.mrf.mxu0
    %v1464 = vadd.f32 %v1435, %v1463
    %1465 = vmatmul.f32.gmra.mxu0 %v1098
    %v1466 = vpop.f32.mrf.mxu0
    %v1467 = vadd.f32 %v1438, %v1466
    %1468 = vmatmul.f32.gmra.mxu0 %v1100
    %v1469 = vpop.f32.mrf.mxu0
    %v1470 = vadd.f32 %v1441, %v1469
    %1471 = vmatmul.f32.gmra.mxu0 %v1102
    %v1472 = vpop.f32.mrf.mxu0
    %v1473 = vadd.f32 %v1444, %v1472
    %1474 = vdwg.mxu0
    %1475 = vmatpush.msra.mxu0 %v1225
    %1476 = vmatpush.msra.mxu0 %v1217
    %1477 = vmatpush.msra.mxu0 %v1209
    %1478 = vmatpush.msra.mxu0 %v1201
    %1479 = vmatpush.msra.mxu0 %v1193
    %1480 = vmatpush.msra.mxu0 %v1185
    %1481 = vmatpush.msra.mxu0 %v1177
    %1482 = vmatpush.msra.mxu0 %v1169
    %1483 = vmatpush.msra.mxu0 %v1161
    %1484 = vmatpush.msra.mxu0 %v1153
    %1485 = vmatpush.msra.mxu0 %v1145
    %1486 = vmatpush.msra.mxu0 %v1137
    %1487 = vmatpush.msra.mxu0 %v1129
    %1488 = vmatpush.msra.mxu0 %v1121
    %1489 = vmatpush.msra.mxu0 %v1113
    %1490 = vmatpush.msra.mxu0 %v1105
    %1491 = vmatmul.f32.gmra.mxu0 %v1095
    %v1492 = vpop.f32.mrf.mxu0
    %v1493 = vadd.f32 0.0, %v1492
    %1494 = vmatmul.f32.gmra.mxu0 %v1097
    %v1495 = vpop.f32.mrf.mxu0
    %v1496 = vadd.f32 0.0, %v1495
    %1497 = vmatmul.f32.gmra.mxu0 %v1099
    %v1498 = vpop.f32.mrf.mxu0
    %v1499 = vadd.f32 0.0, %v1498
    %1500 = vmatmul.f32.gmra.mxu0 %v1101
    %v1501 = vpop.f32.mrf.mxu0
    %v1502 = vadd.f32 0.0, %v1501
    %1503 = vdwg.mxu0
    %1504 = vmatpush.msra.mxu0 %v1353
    %1505 = vmatpush.msra.mxu0 %v1345
    %1506 = vmatpush.msra.mxu0 %v1337
    %1507 = vmatpush.msra.mxu0 %v1329
    %1508 = vmatpush.msra.mxu0 %v1321
    %1509 = vmatpush.msra.mxu0 %v1313
    %1510 = vmatpush.msra.mxu0 %v1305
    %1511 = vmatpush.msra.mxu0 %v1297
    %1512 = vmatpush.msra.mxu0 %v1289
    %1513 = vmatpush.msra.mxu0 %v1281
    %1514 = vmatpush.msra.mxu0 %v1273
    %1515 = vmatpush.msra.mxu0 %v1265
    %1516 = vmatpush.msra.mxu0 %v1257
    %1517 = vmatpush.msra.mxu0 %v1249
    %1518 = vmatpush.msra.mxu0 %v1241
    %1519 = vmatpush.msra.mxu0 %v1233
    %1520 = vmatmul.f32.gmra.mxu0 %v1096
    %v1521 = vpop.f32.mrf.mxu0
    %v1522 = vadd.f32 %v1493, %v1521
    %1523 = vmatmul.f32.gmra.mxu0 %v1098
    %v1524 = vpop.f32.mrf.mxu0
    %v1525 = vadd.f32 %v1496, %v1524
    %1526 = vmatmul.f32.gmra.mxu0 %v1100
    %v1527 = vpop.f32.mrf.mxu0
    %v1528 = vadd.f32 %v1499, %v1527
    %1529 = vmatmul.f32.gmra.mxu0 %v1102
    %v1530 = vpop.f32.mrf.mxu0
    %v1531 = vadd.f32 %v1502, %v1530
    %1532 = vdwg.mxu0
    %1533 = vmatpush.msra.mxu0 %v1226
    %1534 = vmatpush.msra.mxu0 %v1218
    %1535 = vmatpush.msra.mxu0 %v1210
    %1536 = vmatpush.msra.mxu0 %v1202
    %1537 = vmatpush.msra.mxu0 %v1194
    %1538 = vmatpush.msra.mxu0 %v1186
    %1539 = vmatpush.msra.mxu0 %v1178
    %1540 = vmatpush.msra.mxu0 %v1170
    %1541 = vmatpush.msra.mxu0 %v1162
    %1542 = vmatpush.msra.mxu0 %v1154
    %1543 = vmatpush.msra.mxu0 %v1146
    %1544 = vmatpush.msra.mxu0 %v1138
    %1545 = vmatpush.msra.mxu0 %v1130
    %1546 = vmatpush.msra.mxu0 %v1122
    %1547 = vmatpush.msra.mxu0 %v1114
    %1548 = vmatpush.msra.mxu0 %v1106
    %1549 = vmatmul.f32.gmra.mxu0 %v1095
    %v1550 = vpop.f32.mrf.mxu0
    %v1551 = vadd.f32 0.0, %v1550
    %1552 = vmatmul.f32.gmra.mxu0 %v1097
    %v1553 = vpop.f32.mrf.mxu0
    %v1554 = vadd.f32 0.0, %v1553
    %1555 = vmatmul.f32.gmra.mxu0 %v1099
    %v1556 = vpop.f32.mrf.mxu0
    %v1557 = vadd.f32 0.0, %v1556
    %1558 = vmatmul.f32.gmra.mxu0 %v1101
    %v1559 = vpop.f32.mrf.mxu0
    %v1560 = vadd.f32 0.0, %v1559
    %1561 = vdwg.mxu0
    %1562 = vmatpush.msra.mxu0 %v1354
    %1563 = vmatpush.msra.mxu0 %v1346
    %1564 = vmatpush.msra.mxu0 %v1338
    %1565 = vmatpush.msra.mxu0 %v1330
    %1566 = vmatpush.msra.mxu0 %v1322
    %1567 = vmatpush.msra.mxu0 %v1314
    %1568 = vmatpush.msra.mxu0 %v1306
    %1569 = vmatpush.msra.mxu0 %v1298
    %1570 = vmatpush.msra.mxu0 %v1290
    %1571 = vmatpush.msra.mxu0 %v1282
    %1572 = vmatpush.msra.mxu0 %v1274
    %1573 = vmatpush.msra.mxu0 %v1266
    %1574 = vmatpush.msra.mxu0 %v1258
    %1575 = vmatpush.msra.mxu0 %v1250
    %1576 = vmatpush.msra.mxu0 %v1242
    %1577 = vmatpush.msra.mxu0 %v1234
    %1578 = vmatmul.f32.gmra.mxu0 %v1096
    %v1579 = vpop.f32.mrf.mxu0
    %v1580 = vadd.f32 %v1551, %v1579
    %1581 = vmatmul.f32.gmra.mxu0 %v1098
    %v1582 = vpop.f32.mrf.mxu0
    %v1583 = vadd.f32 %v1554, %v1582
    %1584 = vmatmul.f32.gmra.mxu0 %v1100
    %v1585 = vpop.f32.mrf.mxu0
    %v1586 = vadd.f32 %v1557, %v1585
    %1587 = vmatmul.f32.gmra.mxu0 %v1102
    %v1588 = vpop.f32.mrf.mxu0
    %v1589 = vadd.f32 %v1560, %v1588
    %1590 = vdwg.mxu0
    %1591 = vmatpush.msra.mxu0 %v1227
    %1592 = vmatpush.msra.mxu0 %v1219
    %1593 = vmatpush.msra.mxu0 %v1211
    %1594 = vmatpush.msra.mxu0 %v1203
    %1595 = vmatpush.msra.mxu0 %v1195
    %1596 = vmatpush.msra.mxu0 %v1187
    %1597 = vmatpush.msra.mxu0 %v1179
    %1598 = vmatpush.msra.mxu0 %v1171
    %1599 = vmatpush.msra.mxu0 %v1163
    %1600 = vmatpush.msra.mxu0 %v1155
    %1601 = vmatpush.msra.mxu0 %v1147
    %1602 = vmatpush.msra.mxu0 %v1139
    %1603 = vmatpush.msra.mxu0 %v1131
    %1604 = vmatpush.msra.mxu0 %v1123
    %1605 = vmatpush.msra.mxu0 %v1115
    %1606 = vmatpush.msra.mxu0 %v1107
    %1607 = vmatmul.f32.gmra.mxu0 %v1095
    %v1608 = vpop.f32.mrf.mxu0
    %v1609 = vadd.f32 0.0, %v1608
    %1610 = vmatmul.f32.gmra.mxu0 %v1097
    %v1611 = vpop.f32.mrf.mxu0
    %v1612 = vadd.f32 0.0, %v1611
    %1613 = vmatmul.f32.gmra.mxu0 %v1099
    %v1614 = vpop.f32.mrf.mxu0
    %v1615 = vadd.f32 0.0, %v1614
    %1616 = vmatmul.f32.gmra.mxu0 %v1101
    %v1617 = vpop.f32.mrf.mxu0
    %v1618 = vadd.f32 0.0, %v1617
    %1619 = vdwg.mxu0
    %1620 = vmatpush.msra.mxu0 %v1355
    %1621 = vmatpush.msra.mxu0 %v1347
    %1622 = vmatpush.msra.mxu0 %v1339
    %1623 = vmatpush.msra.mxu0 %v1331
    %1624 = vmatpush.msra.mxu0 %v1323
    %1625 = vmatpush.msra.mxu0 %v1315
    %1626 = vmatpush.msra.mxu0 %v1307
    %1627 = vmatpush.msra.mxu0 %v1299
    %1628 = vmatpush.msra.mxu0 %v1291
    %1629 = vmatpush.msra.mxu0 %v1283
    %1630 = vmatpush.msra.mxu0 %v1275
    %1631 = vmatpush.msra.mxu0 %v1267
    %1632 = vmatpush.msra.mxu0 %v1259
    %1633 = vmatpush.msra.mxu0 %v1251
    %1634 = vmatpush.msra.mxu0 %v1243
    %1635 = vmatpush.msra.mxu0 %v1235
    %1636 = vmatmul.f32.gmra.mxu0 %v1096
    %v1637 = vpop.f32.mrf.mxu0
    %v1638 = vadd.f32 %v1609, %v1637
    %1639 = vmatmul.f32.gmra.mxu0 %v1098
    %v1640 = vpop.f32.mrf.mxu0
    %v1641 = vadd.f32 %v1612, %v1640
    %1642 = vmatmul.f32.gmra.mxu0 %v1100
    %v1643 = vpop.f32.mrf.mxu0
    %v1644 = vadd.f32 %v1615, %v1643
    %1645 = vmatmul.f32.gmra.mxu0 %v1102
    %v1646 = vpop.f32.mrf.mxu0
    %v1647 = vadd.f32 %v1618, %v1646
    %1648 = vdwg.mxu0
    %1649 = vmatpush.msra.mxu0 %v1228
    %1650 = vmatpush.msra.mxu0 %v1220
    %1651 = vmatpush.msra.mxu0 %v1212
    %1652 = vmatpush.msra.mxu0 %v1204
    %1653 = vmatpush.msra.mxu0 %v1196
    %1654 = vmatpush.msra.mxu0 %v1188
    %1655 = vmatpush.msra.mxu0 %v1180
    %1656 = vmatpush.msra.mxu0 %v1172
    %1657 = vmatpush.msra.mxu0 %v1164
    %1658 = vmatpush.msra.mxu0 %v1156
    %1659 = vmatpush.msra.mxu0 %v1148
    %1660 = vmatpush.msra.mxu0 %v1140
    %1661 = vmatpush.msra.mxu0 %v1132
    %1662 = vmatpush.msra.mxu0 %v1124
    %1663 = vmatpush.msra.mxu0 %v1116
    %1664 = vmatpush.msra.mxu0 %v1108
    %1665 = vmatmul.f32.gmra.mxu0 %v1095
    %v1666 = vpop.f32.mrf.mxu0
    %v1667 = vadd.f32 0.0, %v1666
    %1668 = vmatmul.f32.gmra.mxu0 %v1097
    %v1669 = vpop.f32.mrf.mxu0
    %v1670 = vadd.f32 0.0, %v1669
    %1671 = vmatmul.f32.gmra.mxu0 %v1099
    %v1672 = vpop.f32.mrf.mxu0
    %v1673 = vadd.f32 0.0, %v1672
    %1674 = vmatmul.f32.gmra.mxu0 %v1101
    %v1675 = vpop.f32.mrf.mxu0
    %v1676 = vadd.f32 0.0, %v1675
    %1677 = vdwg.mxu0
    %1678 = vmatpush.msra.mxu0 %v1356
    %1679 = vmatpush.msra.mxu0 %v1348
    %1680 = vmatpush.msra.mxu0 %v1340
    %1681 = vmatpush.msra.mxu0 %v1332
    %1682 = vmatpush.msra.mxu0 %v1324
    %1683 = vmatpush.msra.mxu0 %v1316
    %1684 = vmatpush.msra.mxu0 %v1308
    %1685 = vmatpush.msra.mxu0 %v1300
    %1686 = vmatpush.msra.mxu0 %v1292
    %1687 = vmatpush.msra.mxu0 %v1284
    %1688 = vmatpush.msra.mxu0 %v1276
    %1689 = vmatpush.msra.mxu0 %v1268
    %1690 = vmatpush.msra.mxu0 %v1260
    %1691 = vmatpush.msra.mxu0 %v1252
    %1692 = vmatpush.msra.mxu0 %v1244
    %1693 = vmatpush.msra.mxu0 %v1236
    %1694 = vmatmul.f32.gmra.mxu0 %v1096
    %v1695 = vpop.f32.mrf.mxu0
    %v1696 = vadd.f32 %v1667, %v1695
    %1697 = vmatmul.f32.gmra.mxu0 %v1098
    %v1698 = vpop.f32.mrf.mxu0
    %v1699 = vadd.f32 %v1670, %v1698
    %1700 = vmatmul.f32.gmra.mxu0 %v1100
    %v1701 = vpop.f32.mrf.mxu0
    %v1702 = vadd.f32 %v1673, %v1701
    %1703 = vmatmul.f32.gmra.mxu0 %v1102
    %v1704 = vpop.f32.mrf.mxu0
    %v1705 = vadd.f32 %v1676, %v1704
    %1706 = vdwg.mxu0
    %1707 = vmatpush.msra.mxu0 %v1229
    %1708 = vmatpush.msra.mxu0 %v1221
    %1709 = vmatpush.msra.mxu0 %v1213
    %1710 = vmatpush.msra.mxu0 %v1205
    %1711 = vmatpush.msra.mxu0 %v1197
    %1712 = vmatpush.msra.mxu0 %v1189
    %1713 = vmatpush.msra.mxu0 %v1181
    %1714 = vmatpush.msra.mxu0 %v1173
    %1715 = vmatpush.msra.mxu0 %v1165
    %1716 = vmatpush.msra.mxu0 %v1157
    %1717 = vmatpush.msra.mxu0 %v1149
    %1718 = vmatpush.msra.mxu0 %v1141
    %1719 = vmatpush.msra.mxu0 %v1133
    %1720 = vmatpush.msra.mxu0 %v1125
    %1721 = vmatpush.msra.mxu0 %v1117
    %1722 = vmatpush.msra.mxu0 %v1109
    %1723 = vmatmul.f32.gmra.mxu0 %v1095
    %v1724 = vpop.f32.mrf.mxu0
    %v1725 = vadd.f32 0.0, %v1724
    %1726 = vmatmul.f32.gmra.mxu0 %v1097
    %v1727 = vpop.f32.mrf.mxu0
    %v1728 = vadd.f32 0.0, %v1727
    %1729 = vmatmul.f32.gmra.mxu0 %v1099
    %v1730 = vpop.f32.mrf.mxu0
    %v1731 = vadd.f32 0.0, %v1730
    %1732 = vmatmul.f32.gmra.mxu0 %v1101
    %v1733 = vpop.f32.mrf.mxu0
    %v1734 = vadd.f32 0.0, %v1733
    %1735 = vdwg.mxu0
    %1736 = vmatpush.msra.mxu0 %v1357
    %1737 = vmatpush.msra.mxu0 %v1349
    %1738 = vmatpush.msra.mxu0 %v1341
    %1739 = vmatpush.msra.mxu0 %v1333
    %1740 = vmatpush.msra.mxu0 %v1325
    %1741 = vmatpush.msra.mxu0 %v1317
    %1742 = vmatpush.msra.mxu0 %v1309
    %1743 = vmatpush.msra.mxu0 %v1301
    %1744 = vmatpush.msra.mxu0 %v1293
    %1745 = vmatpush.msra.mxu0 %v1285
    %1746 = vmatpush.msra.mxu0 %v1277
    %1747 = vmatpush.msra.mxu0 %v1269
    %1748 = vmatpush.msra.mxu0 %v1261
    %1749 = vmatpush.msra.mxu0 %v1253
    %1750 = vmatpush.msra.mxu0 %v1245
    %1751 = vmatpush.msra.mxu0 %v1237
    %1752 = vmatmul.f32.gmra.mxu0 %v1096
    %v1753 = vpop.f32.mrf.mxu0
    %v1754 = vadd.f32 %v1725, %v1753
    %1755 = vmatmul.f32.gmra.mxu0 %v1098
    %v1756 = vpop.f32.mrf.mxu0
    %v1757 = vadd.f32 %v1728, %v1756
    %1758 = vmatmul.f32.gmra.mxu0 %v1100
    %v1759 = vpop.f32.mrf.mxu0
    %v1760 = vadd.f32 %v1731, %v1759
    %1761 = vmatmul.f32.gmra.mxu0 %v1102
    %v1762 = vpop.f32.mrf.mxu0
    %v1763 = vadd.f32 %v1734, %v1762
    %1764 = vdwg.mxu0
    %1765 = vmatpush.msra.mxu0 %v1230
    %1766 = vmatpush.msra.mxu0 %v1222
    %1767 = vmatpush.msra.mxu0 %v1214
    %1768 = vmatpush.msra.mxu0 %v1206
    %1769 = vmatpush.msra.mxu0 %v1198
    %1770 = vmatpush.msra.mxu0 %v1190
    %1771 = vmatpush.msra.mxu0 %v1182
    %1772 = vmatpush.msra.mxu0 %v1174
    %1773 = vmatpush.msra.mxu0 %v1166
    %1774 = vmatpush.msra.mxu0 %v1158
    %1775 = vmatpush.msra.mxu0 %v1150
    %1776 = vmatpush.msra.mxu0 %v1142
    %1777 = vmatpush.msra.mxu0 %v1134
    %1778 = vmatpush.msra.mxu0 %v1126
    %1779 = vmatpush.msra.mxu0 %v1118
    %1780 = vmatpush.msra.mxu0 %v1110
    %1781 = vmatmul.f32.gmra.mxu0 %v1095
    %v1782 = vpop.f32.mrf.mxu0
    %v1783 = vadd.f32 0.0, %v1782
    %1784 = vmatmul.f32.gmra.mxu0 %v1097
    %v1785 = vpop.f32.mrf.mxu0
    %v1786 = vadd.f32 0.0, %v1785
    %1787 = vmatmul.f32.gmra.mxu0 %v1099
    %v1788 = vpop.f32.mrf.mxu0
    %v1789 = vadd.f32 0.0, %v1788
    %1790 = vmatmul.f32.gmra.mxu0 %v1101
    %v1791 = vpop.f32.mrf.mxu0
    %v1792 = vadd.f32 0.0, %v1791
    %1793 = vdwg.mxu0
    %1794 = vmatpush.msra.mxu0 %v1358
    %1795 = vmatpush.msra.mxu0 %v1350
    %1796 = vmatpush.msra.mxu0 %v1342
    %1797 = vmatpush.msra.mxu0 %v1334
    %1798 = vmatpush.msra.mxu0 %v1326
    %1799 = vmatpush.msra.mxu0 %v1318
    %1800 = vmatpush.msra.mxu0 %v1310
    %1801 = vmatpush.msra.mxu0 %v1302
    %1802 = vmatpush.msra.mxu0 %v1294
    %1803 = vmatpush.msra.mxu0 %v1286
    %1804 = vmatpush.msra.mxu0 %v1278
    %1805 = vmatpush.msra.mxu0 %v1270
    %1806 = vmatpush.msra.mxu0 %v1262
    %1807 = vmatpush.msra.mxu0 %v1254
    %1808 = vmatpush.msra.mxu0 %v1246
    %1809 = vmatpush.msra.mxu0 %v1238
    %1810 = vmatmul.f32.gmra.mxu0 %v1096
    %v1811 = vpop.f32.mrf.mxu0
    %v1812 = vadd.f32 %v1783, %v1811
    %1813 = vmatmul.f32.gmra.mxu0 %v1098
    %v1814 = vpop.f32.mrf.mxu0
    %v1815 = vadd.f32 %v1786, %v1814
    %1816 = vmatmul.f32.gmra.mxu0 %v1100
    %v1817 = vpop.f32.mrf.mxu0
    %v1818 = vadd.f32 %v1789, %v1817
    %1819 = vmatmul.f32.gmra.mxu0 %v1102
    %v1820 = vpop.f32.mrf.mxu0
    %v1821 = vadd.f32 %v1792, %v1820
    %1822 = vdwg.mxu0
    %1823 = vst [vmem:[%s5] sm:$0xff] %v1406
    %1824 = vst [vmem:[%s5 + $0x8] sm:$0xff] %v1464
    %1825 = vst [vmem:[%s5 + $0x10] sm:$0xff] %v1522
    %1826 = vst [vmem:[%s5 + $0x18] sm:$0xff] %v1580
    %1827 = vst [vmem:[%s5 + $0x20] sm:$0xff] %v1638
    %1828 = vst [vmem:[%s5 + $0x28] sm:$0xff] %v1696
    %1829 = vst [vmem:[%s5 + $0x30] sm:$0xff] %v1754
    %1830 = vst [vmem:[%s5 + $0x38] sm:$0xff] %v1812
    %1831 = vst [vmem:[%s5 + $0x40] sm:$0xff] %v1409
    %1832 = vst [vmem:[%s5 + $0x48] sm:$0xff] %v1467
    %1833 = vst [vmem:[%s5 + $0x50] sm:$0xff] %v1525
    %1834 = vst [vmem:[%s5 + $0x58] sm:$0xff] %v1583
    %1835 = vst [vmem:[%s5 + $0x60] sm:$0xff] %v1641
    %1836 = vst [vmem:[%s5 + $0x68] sm:$0xff] %v1699
    %1837 = vst [vmem:[%s5 + $0x70] sm:$0xff] %v1757
    %1838 = vst [vmem:[%s5 + $0x78] sm:$0xff] %v1815
    %1839 = vst [vmem:[%s5 + $0x80] sm:$0xff] %v1412
    %1840 = vst [vmem:[%s5 + $0x88] sm:$0xff] %v1470
    %1841 = vst [vmem:[%s5 + $0x90] sm:$0xff] %v1528
    %1842 = vst [vmem:[%s5 + $0x98] sm:$0xff] %v1586
    %1843 = vst [vmem:[%s5 + $0xa0] sm:$0xff] %v1644
    %1844 = vst [vmem:[%s5 + $0xa8] sm:$0xff] %v1702
    %1845 = vst [vmem:[%s5 + $0xb0] sm:$0xff] %v1760
    %1846 = vst [vmem:[%s5 + $0xb8] sm:$0xff] %v1818
    %1847 = vst [vmem:[%s5 + $0xc0] sm:$0xff] %v1415
    %1848 = vst [vmem:[%s5 + $0xc8] sm:$0xff] %v1473
    %1849 = vst [vmem:[%s5 + $0xd0] sm:$0xff] %v1531
    %1850 = vst [vmem:[%s5 + $0xd8] sm:$0xff] %v1589
    %1851 = vst [vmem:[%s5 + $0xe0] sm:$0xff] %v1647
    %1852 = vst [vmem:[%s5 + $0xe8] sm:$0xff] %v1705
    %1853 = vst [vmem:[%s5 + $0xf0] sm:$0xff] %v1763
    %1854 = vst [vmem:[%s5 + $0xf8] sm:$0xff] %v1821
    // Predicated region
    $region26: #{decode_forward.1} parent=1 // pred_check
      _
    $region27: #{decode_forward.1} parent=1 // pred_check_branch
      %1856 = sbr.rel (0) target = $region29
    $region28: #{decode_forward.1} parent=1 // pred_region
      _
    $region29: #{decode_forward.1} parent=1 // pred_fallthru
      _
    // Predicated region
    $region30: #{decode_forward.1} parent=1 // pred_check
      _
    $region31: #{decode_forward.1} parent=1 // pred_check_branch
      %1858 = sbr.rel (0) target = $region33
    $region32: #{decode_forward.1} parent=1 // pred_region
      _
    $region33: #{decode_forward.1} parent=1 // pred_fallthru
      _
    %1859 = vsyncpa [#allocation3], 1

</llo_original>
